<compile_context>
chip_gen: v7x
topology: tpu7x:2x2x1
jax: 0.10.0
libtpu: 0.0.40
codegen_flags: <defaults>
</compile_context>

<pallas_src>
import functools

import jax
import jax.numpy as jnp
from jax.experimental import pallas as pl
from jax.experimental.pallas import tpu as pltpu


def _round_up(x, m):
    return (x + m - 1) // m * m


# ----------------------------------------------------------------------------
# Fused conv (as im2col GEMM) + bias + ReLU + 2x2 max-pool
# ----------------------------------------------------------------------------

def conv_relu_pool_kernel(p_ref, w_ref, b_ref, o_ref, *, n_off):
    """p_ref: (TILE_N, K) pooled-receptive-field patches
       w_ref: (K, n_off*Cout) weights embedded at each pool offset
       b_ref: (1, Cout) bias (f32)
       o_ref: (TILE_N, Cout)
    """
    # One wide MXU matmul covering all pool offsets (lane-packed result).
    y = jnp.dot(p_ref[...], w_ref[...], preferred_element_type=jnp.float32)
    cout = o_ref.shape[-1]
    # Max over the pool-window column groups (VPU / XLU work, off the MXU path).
    acc = y[:, 0:cout]
    for k in range(1, n_off):
        acc = jnp.maximum(acc, y[:, k * cout:(k + 1) * cout])
    # Bias hoisted out of the max (max(a+b, c+b) == max(a,c)+b); ReLU commutes
    # with max, so this matches conv -> +bias -> ReLU -> maxpool exactly.
    o_ref[...] = jnp.maximum(acc + b_ref[...], 0.0).astype(o_ref.dtype)


def im2col_pooled(x, ksize, pool):
    """x: (B, H, W, C) -> patches over the pooled receptive field.

    Returns (B*PH*PW, KK*KK*C) with KK = ksize + pool - 1 (8 for 7x7 conv,
    2x2 pool), i.e. one row per *pooled* output position.
    """
    B, H, W, C = x.shape
    OH, OW = H - ksize + 1, W - ksize + 1
    PH, PW = OH // pool, OW // pool
    kk = ksize + pool - 1
    taps = []
    for r in range(kk):
        for c in range(kk):
            sl = x[:, r:r + pool * (PH - 1) + 1:pool,
                      c:c + pool * (PW - 1) + 1:pool, :]          # (B, PH, PW, C)
            taps.append(sl)
    col = jnp.stack(taps, axis=3)                                  # (B, PH, PW, kk*kk, C)
    return col.reshape(B * PH * PW, kk * kk * C), (B, PH, PW)


def pack_conv_weights(w_hwio, pool):
    """Embed the (k,k,Cin,Cout) kernel at each pool offset of a (k+pool-1)^2
    frame and concatenate along the output-channel axis -> (KK*KK*Cin, P*Cout)."""
    k, _, cin, cout = w_hwio.shape
    kk = k + pool - 1
    cols = []
    for di in range(pool):
        for dj in range(pool):
            wemb = jnp.zeros((kk, kk, cin, cout), w_hwio.dtype)
            wemb = wemb.at[di:di + k, dj:dj + k, :, :].set(w_hwio)
            cols.append(wemb.reshape(kk * kk * cin, cout))
    return jnp.concatenate(cols, axis=1)


def conv_relu_pool(x_nhwc, w_hwio, bias, *, pool=2, compute_dtype=jnp.float32):
    ksize, _, _, cout = w_hwio.shape
    n_off = pool * pool

    patches, (B, PH, PW) = im2col_pooled(x_nhwc, ksize, pool)      # (N, K)
    w_packed = pack_conv_weights(w_hwio, pool)                     # (K, n_off*cout)

    # bf16 data path (f32 accumulation in the kernel) if requested.
    patches = patches.astype(compute_dtype)
    w_packed = w_packed.astype(compute_dtype)

    N, K = patches.shape
    # Row tile: 256 rows in f32 (v7x VMEM headroom), 512 in bf16.
    max_tile = 512 if compute_dtype == jnp.bfloat16 else 256
    tile = min(max_tile, _round_up(N, 8))
    n_pad = _round_up(N, tile)
    if n_pad != N:
        patches = jnp.pad(patches, ((0, n_pad - N), (0, 0)))

    out = pl.pallas_call(
        functools.partial(conv_relu_pool_kernel, n_off=n_off),
        out_shape=jax.ShapeDtypeStruct((n_pad, cout), x_nhwc.dtype),
        grid_spec=pltpu.PrefetchScalarGridSpec(
            num_scalar_prefetch=0,
            grid=(n_pad // tile,),
            in_specs=[
                pl.BlockSpec((tile, K), lambda i: (i, 0)),            # patches
                pl.BlockSpec((K, n_off * cout), lambda i: (0, 0)),    # packed weights
                pl.BlockSpec((1, cout), lambda i: (0, 0)),            # bias
            ],
            out_specs=pl.BlockSpec((tile, cout), lambda i: (i, 0)),
        ),
        compiler_params=pltpu.CompilerParams(
            dimension_semantics=("parallel",),
            vmem_limit_bytes=32 * 1024 * 1024,
        ),
    )(patches, w_packed, bias.astype(jnp.float32).reshape(1, cout))

    return out[:N].reshape(B, PH, PW, cout)


# ----------------------------------------------------------------------------
# Linear(400, 1): VPU multiply + row-sum (no 1-lane MXU matmul)
# ----------------------------------------------------------------------------

def linear_rowsum_kernel(x_ref, w_ref, b_ref, o_ref):
    prod = x_ref[...] * w_ref[...]                                  # (TILE_B, D)
    o_ref[...] = (jnp.sum(prod, axis=-1, keepdims=True)
                  + b_ref[...]).astype(o_ref.dtype)


def linear_1out(x, w, bias):
    Bn, D = x.shape
    tile = min(256, _round_up(Bn, 8))
    b_pad = _round_up(Bn, tile)
    if b_pad != Bn:
        x = jnp.pad(x, ((0, b_pad - Bn), (0, 0)))
    out = pl.pallas_call(
        linear_rowsum_kernel,
        out_shape=jax.ShapeDtypeStruct((b_pad, 1), x.dtype),
        grid_spec=pltpu.PrefetchScalarGridSpec(
            num_scalar_prefetch=0,
            grid=(b_pad // tile,),
            in_specs=[
                pl.BlockSpec((tile, D), lambda i: (i, 0)),
                pl.BlockSpec((1, D), lambda i: (0, 0)),
                pl.BlockSpec((1, 1), lambda i: (0, 0)),
            ],
            out_specs=pl.BlockSpec((tile, 1), lambda i: (i, 0)),
        ),
        compiler_params=pltpu.CompilerParams(dimension_semantics=("parallel",)),
    )(x, w.reshape(1, D).astype(x.dtype), bias.reshape(1, 1).astype(x.dtype))
    return out[:Bn]


# ----------------------------------------------------------------------------
# Model
# ----------------------------------------------------------------------------

def init_params(key):
    k1, k2, k3, k4, k5, k6 = jax.random.split(key, 6)
    return dict(
        w1=jax.random.normal(k1, (7, 7, 3, 32), jnp.float32) * 0.05,    # Conv2d(3, 32, 7)
        b1=jax.random.normal(k2, (32,), jnp.float32) * 0.05,
        w2=jax.random.normal(k3, (7, 7, 32, 16), jnp.float32) * 0.05,   # Conv2d(32, 16, 7)
        b2=jax.random.normal(k4, (16,), jnp.float32) * 0.05,
        w_out=jax.random.normal(k5, (16 * 5 * 5, 1), jnp.float32) * 0.05,  # Linear(400, 1)
        b_out=jax.random.normal(k6, (1,), jnp.float32) * 0.05,
    )


@functools.partial(jax.jit, static_argnames=("compute_dtype",))
def cnn_forward(x_nchw, params, compute_dtype=jnp.float32):
    # NCHW (PyTorch convention) -> NHWC (kernel layout)
    x = jnp.transpose(x_nchw, (0, 2, 3, 1))
    x = conv_relu_pool(x, params["w1"], params["b1"], pool=2,
                       compute_dtype=compute_dtype)                 # (B, 16, 16, 32)
    x = conv_relu_pool(x, params["w2"], params["b2"], pool=2,
                       compute_dtype=compute_dtype)                 # (B, 5, 5, 16)
    # Flatten in PyTorch (C, H, W) order to match x.view(B, -1) on NCHW; this
    # permuted tensor is also a module output, so the tiny transpose stays.
    flat = jnp.transpose(x, (0, 3, 1, 2)).reshape(x.shape[0], -1)   # (B, 400)
    out = linear_1out(flat, params["w_out"], params["b_out"])       # (B, 1)
    return out, flat


def reference_forward(x_nchw, params):
    """Pure-JAX reference for numerical validation."""
    x = jnp.transpose(x_nchw, (0, 2, 3, 1))

    def block(x, w, b):
        y = jax.lax.conv_general_dilated(
            x, w, (1, 1), "VALID",
            dimension_numbers=("NHWC", "HWIO", "NHWC")) + b
        y = jnp.maximum(y, 0.0)
        return jax.lax.reduce_window(y, -jnp.inf, jax.lax.max,
                                     (1, 2, 2, 1), (1, 2, 2, 1), "VALID")

    x = block(x, params["w1"], params["b1"])
    x = block(x, params["w2"], params["b2"])
    flat = jnp.transpose(x, (0, 3, 1, 2)).reshape(x.shape[0], -1)
    out = flat @ params["w_out"] + params["b_out"]
    return out, flat


if __name__ == "__main__":
    key = jax.random.PRNGKey(0)
    kx, kp = jax.random.split(key)
    # 38x38 input is what the module implies: (38-6)/2 = 16 -> (16-6)/2 = 5 -> 16*5*5 = 400
    x = jax.random.normal(kx, (2, 3, 38, 38), jnp.float32)
    params = init_params(kp)

    ref_out, ref_feat = reference_forward(x, params)

    # f32 compute path: tight check against the pure-JAX reference.
    out, feat = cnn_forward(x, params, compute_dtype=jnp.float32)
    jax.block_until_ready((out, feat))
    assert out.shape == (2, 1), out.shape
    assert feat.shape == (2, 400), feat.shape
    assert jnp.allclose(out, ref_out, atol=1e-3, rtol=1e-3)
    assert jnp.allclose(feat, ref_feat, atol=1e-3, rtol=1e-3)

    # bf16 compute path (the perf configuration for v5e/v6e/v7x): f32 accumulate,
    # looser tolerance against the f32 reference.
    out_bf, feat_bf = cnn_forward(x, params, compute_dtype=jnp.bfloat16)
    jax.block_until_ready((out_bf, feat_bf))
    assert jnp.allclose(feat_bf, ref_feat, atol=5e-2, rtol=5e-2)
    assert jnp.allclose(out_bf, ref_out, atol=5e-2, rtol=5e-2)

    print("KERNEL_OK")
</pallas_src>

<mosaic_0001>
module attributes {stable_mosaic.version = 11 : i64} {
  func.func @conv_relu_pool_kernel(%arg0: i32, %arg1: memref<256x192xf32, #tpu.memory_space<vmem>>, %arg2: memref<192x128xf32, #tpu.memory_space<vmem>>, %arg3: memref<1x32xf32, #tpu.memory_space<vmem>>, %arg4: memref<256x32xf32, #tpu.memory_space<vmem>>) attributes {dimension_semantics = [#tpu.dimension_semantics<parallel>], iteration_bounds = array<i64: 2>, scalar_prefetch = 0 : i64, scratch_operands = 0 : i64, tpu.core_type = #tpu.core_type<tc>, window_params = [{transform_indices = @transform_0, window_bounds = array<i64: 256, 192>}, {pipeline_mode = #tpu.pipeline_mode<synchronous>, transform_indices = @transform_1, window_bounds = array<i64: 192, 128>}, {pipeline_mode = #tpu.pipeline_mode<synchronous>, transform_indices = @transform_2, window_bounds = array<i64: 1, 32>}, {transform_indices = @transform_3, window_bounds = array<i64: 256, 32>}]} {
    %c0 = arith.constant 0 : index
    %c0_0 = arith.constant 0 : index
    %0 = vector.load %arg1[%c0, %c0_0] : memref<256x192xf32, #tpu.memory_space<vmem>>, vector<256x192xf32>
    %c0_1 = arith.constant 0 : index
    %c0_2 = arith.constant 0 : index
    %1 = vector.load %arg2[%c0_1, %c0_2] : memref<192x128xf32, #tpu.memory_space<vmem>>, vector<192x128xf32>
    %cst = arith.constant dense<0.000000e+00> : vector<256x128xf32>
    %2 = tpu.matmul %0, %1, %cst {dimension_numbers = #tpu.dot_dimension_numbers<[1], [0], [0], [1], [0, 0, 1, 1], [], []>} : vector<256x192xf32>, vector<192x128xf32>, vector<256x128xf32> -> vector<256x128xf32>
    %3 = vector.extract_strided_slice %2 {offsets = [0, 0], sizes = [256, 32], strides = [1, 1]} : vector<256x128xf32> to vector<256x32xf32>
    %4 = vector.extract_strided_slice %2 {offsets = [0, 32], sizes = [256, 32], strides = [1, 1]} : vector<256x128xf32> to vector<256x32xf32>
    %5 = arith.maximumf %3, %4 : vector<256x32xf32>
    %6 = vector.extract_strided_slice %2 {offsets = [0, 64], sizes = [256, 32], strides = [1, 1]} : vector<256x128xf32> to vector<256x32xf32>
    %7 = arith.maximumf %5, %6 : vector<256x32xf32>
    %8 = vector.extract_strided_slice %2 {offsets = [0, 96], sizes = [256, 32], strides = [1, 1]} : vector<256x128xf32> to vector<256x32xf32>
    %9 = arith.maximumf %7, %8 : vector<256x32xf32>
    %c0_3 = arith.constant 0 : index
    %c0_4 = arith.constant 0 : index
    %10 = vector.load %arg3[%c0_3, %c0_4] : memref<1x32xf32, #tpu.memory_space<vmem>>, vector<1x32xf32>
    %11 = vector.broadcast %10 : vector<1x32xf32> to vector<256x32xf32>
    %12 = arith.addf %9, %11 : vector<256x32xf32>
    %cst_5 = arith.constant 0.000000e+00 : f32
    %13 = vector.broadcast %cst_5 : f32 to vector<256x32xf32>
    %14 = arith.maximumf %12, %13 : vector<256x32xf32>
    %c0_6 = arith.constant 0 : index
    %c0_7 = arith.constant 0 : index
    %15 = vector.load %arg4[%c0_6, %c0_7] : memref<256x32xf32, #tpu.memory_space<vmem>>, vector<256x32xf32>
    tpu.vector_store %arg4[%c0_6, %c0_7], %14 {strides = array<i32>} : memref<256x32xf32, #tpu.memory_space<vmem>>, vector<256x32xf32>,
    return
  }
  func.func @transform_0(%arg0: i32) -> (i32, i32) {
    %c0_i32 = arith.constant 0 : i32
    %c0_i32_0 = arith.constant 0 : i32
    return %arg0, %c0_i32 : i32, i32
  }
  func.func @transform_1(%arg0: i32) -> (i32, i32) {
    %c0_i32 = arith.constant 0 : i32
    %c0_i32_0 = arith.constant 0 : i32
    %c0_i32_1 = arith.constant 0 : i32
    return %c0_i32, %c0_i32_0 : i32, i32
  }
  func.func @transform_2(%arg0: i32) -> (i32, i32) {
    %c0_i32 = arith.constant 0 : i32
    %c0_i32_0 = arith.constant 0 : i32
    %c0_i32_1 = arith.constant 0 : i32
    return %c0_i32, %c0_i32_0 : i32, i32
  }
  func.func @transform_3(%arg0: i32) -> (i32, i32) {
    %c0_i32 = arith.constant 0 : i32
    %c0_i32_0 = arith.constant 0 : i32
    return %arg0, %c0_i32 : i32, i32
  }
}

module attributes {stable_mosaic.version = 11 : i64} {
  func.func @conv_relu_pool_kernel(%arg0: i32, %arg1: memref<56x2048xf32, #tpu.memory_space<vmem>>, %arg2: memref<2048x64xf32, #tpu.memory_space<vmem>>, %arg3: memref<1x16xf32, #tpu.memory_space<vmem>>, %arg4: memref<56x16xf32, #tpu.memory_space<vmem>>) attributes {dimension_semantics = [#tpu.dimension_semantics<parallel>], iteration_bounds = array<i64: 1>, scalar_prefetch = 0 : i64, scratch_operands = 0 : i64, tpu.core_type = #tpu.core_type<tc>, window_params = [{transform_indices = @transform_0, window_bounds = array<i64: 56, 2048>}, {pipeline_mode = #tpu.pipeline_mode<synchronous>, transform_indices = @transform_1, window_bounds = array<i64: 2048, 64>}, {pipeline_mode = #tpu.pipeline_mode<synchronous>, transform_indices = @transform_2, window_bounds = array<i64: 1, 16>}, {transform_indices = @transform_3, window_bounds = array<i64: 56, 16>}]} {
    %c0 = arith.constant 0 : index
    %c0_0 = arith.constant 0 : index
    %0 = vector.load %arg1[%c0, %c0_0] : memref<56x2048xf32, #tpu.memory_space<vmem>>, vector<56x2048xf32>
    %c0_1 = arith.constant 0 : index
    %c0_2 = arith.constant 0 : index
    %1 = vector.load %arg2[%c0_1, %c0_2] : memref<2048x64xf32, #tpu.memory_space<vmem>>, vector<2048x64xf32>
    %cst = arith.constant dense<0.000000e+00> : vector<56x64xf32>
    %2 = tpu.matmul %0, %1, %cst {dimension_numbers = #tpu.dot_dimension_numbers<[1], [0], [0], [1], [0, 0, 1, 1], [], []>} : vector<56x2048xf32>, vector<2048x64xf32>, vector<56x64xf32> -> vector<56x64xf32>
    %3 = vector.extract_strided_slice %2 {offsets = [0, 0], sizes = [56, 16], strides = [1, 1]} : vector<56x64xf32> to vector<56x16xf32>
    %4 = vector.extract_strided_slice %2 {offsets = [0, 16], sizes = [56, 16], strides = [1, 1]} : vector<56x64xf32> to vector<56x16xf32>
    %5 = arith.maximumf %3, %4 : vector<56x16xf32>
    %6 = vector.extract_strided_slice %2 {offsets = [0, 32], sizes = [56, 16], strides = [1, 1]} : vector<56x64xf32> to vector<56x16xf32>
    %7 = arith.maximumf %5, %6 : vector<56x16xf32>
    %8 = vector.extract_strided_slice %2 {offsets = [0, 48], sizes = [56, 16], strides = [1, 1]} : vector<56x64xf32> to vector<56x16xf32>
    %9 = arith.maximumf %7, %8 : vector<56x16xf32>
    %c0_3 = arith.constant 0 : index
    %c0_4 = arith.constant 0 : index
    %10 = vector.load %arg3[%c0_3, %c0_4] : memref<1x16xf32, #tpu.memory_space<vmem>>, vector<1x16xf32>
    %11 = vector.broadcast %10 : vector<1x16xf32> to vector<56x16xf32>
    %12 = arith.addf %9, %11 : vector<56x16xf32>
    %cst_5 = arith.constant 0.000000e+00 : f32
    %13 = vector.broadcast %cst_5 : f32 to vector<56x16xf32>
    %14 = arith.maximumf %12, %13 : vector<56x16xf32>
    %c0_6 = arith.constant 0 : index
    %c0_7 = arith.constant 0 : index
    %15 = vector.load %arg4[%c0_6, %c0_7] : memref<56x16xf32, #tpu.memory_space<vmem>>, vector<56x16xf32>
    tpu.vector_store %arg4[%c0_6, %c0_7], %14 {strides = array<i32>} : memref<56x16xf32, #tpu.memory_space<vmem>>, vector<56x16xf32>,
    return
  }
  func.func @transform_0(%arg0: i32) -> (i32, i32) {
    %c0_i32 = arith.constant 0 : i32
    %c0_i32_0 = arith.constant 0 : i32
    return %arg0, %c0_i32 : i32, i32
  }
  func.func @transform_1(%arg0: i32) -> (i32, i32) {
    %c0_i32 = arith.constant 0 : i32
    %c0_i32_0 = arith.constant 0 : i32
    %c0_i32_1 = arith.constant 0 : i32
    return %c0_i32, %c0_i32_0 : i32, i32
  }
  func.func @transform_2(%arg0: i32) -> (i32, i32) {
    %c0_i32 = arith.constant 0 : i32
    %c0_i32_0 = arith.constant 0 : i32
    %c0_i32_1 = arith.constant 0 : i32
    return %c0_i32, %c0_i32_0 : i32, i32
  }
  func.func @transform_3(%arg0: i32) -> (i32, i32) {
    %c0_i32 = arith.constant 0 : i32
    %c0_i32_0 = arith.constant 0 : i32
    return %arg0, %c0_i32 : i32, i32
  }
}

module attributes {stable_mosaic.version = 11 : i64} {
  func.func @linear_rowsum_kernel(%arg0: i32, %arg1: memref<8x400xf32, #tpu.memory_space<vmem>>, %arg2: memref<1x400xf32, #tpu.memory_space<vmem>>, %arg3: memref<1x1xf32, #tpu.memory_space<vmem>>, %arg4: memref<8x1xf32, #tpu.memory_space<vmem>>) attributes {dimension_semantics = [#tpu.dimension_semantics<parallel>], iteration_bounds = array<i64: 1>, scalar_prefetch = 0 : i64, scratch_operands = 0 : i64, tpu.core_type = #tpu.core_type<tc>, window_params = [{transform_indices = @transform_0, window_bounds = array<i64: 8, 400>}, {pipeline_mode = #tpu.pipeline_mode<synchronous>, transform_indices = @transform_1, window_bounds = array<i64: 1, 400>}, {pipeline_mode = #tpu.pipeline_mode<synchronous>, transform_indices = @transform_2, window_bounds = array<i64: 1, 1>}, {transform_indices = @transform_3, window_bounds = array<i64: 8, 1>}]} {
    %c0 = arith.constant 0 : index
    %c0_0 = arith.constant 0 : index
    %0 = vector.load %arg1[%c0, %c0_0] : memref<8x400xf32, #tpu.memory_space<vmem>>, vector<8x400xf32>
    %c0_1 = arith.constant 0 : index
    %c0_2 = arith.constant 0 : index
    %1 = vector.load %arg2[%c0_1, %c0_2] : memref<1x400xf32, #tpu.memory_space<vmem>>, vector<1x400xf32>
    %2 = vector.broadcast %1 : vector<1x400xf32> to vector<8x400xf32>
    %3 = arith.mulf %0, %2 : vector<8x400xf32>
    %cst = arith.constant dense<0.000000e+00> : vector<8xf32>
    %4 = vector.multi_reduction <add>, %3, %cst [1] : vector<8x400xf32> to vector<8xf32>
    %5 = vector.shape_cast %4 : vector<8xf32> to vector<8x1xf32>
    %c0_3 = arith.constant 0 : index
    %c0_4 = arith.constant 0 : index
    %6 = vector.load %arg3[%c0_3, %c0_4] : memref<1x1xf32, #tpu.memory_space<vmem>>, vector<1x1xf32>
    %7 = vector.broadcast %6 : vector<1x1xf32> to vector<8x1xf32>
    %8 = arith.addf %5, %7 : vector<8x1xf32>
    %c0_5 = arith.constant 0 : index
    %c0_6 = arith.constant 0 : index
    %9 = vector.load %arg4[%c0_5, %c0_6] : memref<8x1xf32, #tpu.memory_space<vmem>>, vector<8x1xf32>
    tpu.vector_store %arg4[%c0_5, %c0_6], %8 {strides = array<i32>} : memref<8x1xf32, #tpu.memory_space<vmem>>, vector<8x1xf32>,
    return
  }
  func.func @transform_0(%arg0: i32) -> (i32, i32) {
    %c0_i32 = arith.constant 0 : i32
    %c0_i32_0 = arith.constant 0 : i32
    return %arg0, %c0_i32 : i32, i32
  }
  func.func @transform_1(%arg0: i32) -> (i32, i32) {
    %c0_i32 = arith.constant 0 : i32
    %c0_i32_0 = arith.constant 0 : i32
    %c0_i32_1 = arith.constant 0 : i32
    return %c0_i32, %c0_i32_0 : i32, i32
  }
  func.func @transform_2(%arg0: i32) -> (i32, i32) {
    %c0_i32 = arith.constant 0 : i32
    %c0_i32_0 = arith.constant 0 : i32
    %c0_i32_1 = arith.constant 0 : i32
    return %c0_i32, %c0_i32_0 : i32, i32
  }
  func.func @transform_3(%arg0: i32) -> (i32, i32) {
    %c0_i32 = arith.constant 0 : i32
    %c0_i32_0 = arith.constant 0 : i32
    return %arg0, %c0_i32 : i32, i32
  }
}

</mosaic_0001>

<llo_original>
// kernel: cnn_forward.3
$region0: #{cnn_forward.3}
  #allocation0 [shape = 'u32[]', space=smem, size = 0x4, offset = 0x4, fixed_abs, tag = 'smem constant byte address 0x4 - core index']
  #allocation1 [shape = 'u32[144,128]{1,0:T(1,128)}', space=vmem, size = 0x12000, scoped, tag = 'internal scratch']
  %s0 = inlined_call_operand.vmem [shape: f32[512,192], index: 0, kind: input, shape index: {}]
  %s1 = inlined_call_operand.vmem [shape: f32[192,128], index: 1, kind: input, shape index: {}]
  %s2 = inlined_call_operand.vmem [shape: f32[1,32], index: 2, kind: input, shape index: {}]
  %s3 = inlined_call_operand.vmem [shape: f32[512,32], index: 3, kind: output, shape index: {}]
  %s4 = sld [smem:[#allocation0]]
  $region45: #{cnn_forward.3} parent=0
    _
  %s6 = ssub.s32 1, %s4
  %s7 = scalar_select 0, %s6, %s4
  loop: start=0, step=1, limit=4
  $region2: #{cnn_forward.3} parent=0 // loop_pre_header
    _
  $region3: #{cnn_forward.3} parent=0 // loop_header
    %s9 = sphi 0, %s13
    %p10 = scmp.ge.s32.totalorder %s9, 4
    %s19 = sphi 0, %s21
    %s22 = sphi 0, %s19
    %s23 = sphi 0, %s22
    %s39 = sphi 0, %s23
    %s43 = sphi 0, %s43
    %s45 = sphi 0, %s43
    %s46 = sphi 0, %s45
    %s60 = sphi 0, %s46
    %s64 = sphi 0, %s64
    %s66 = sphi 0, %s64
    %s67 = sphi 0, %s66
    %s81 = sphi 0, %s67
    %s87 = sphi 0, %s89
    %s90 = sphi 0, %s87
    %s91 = sphi 0, %s90
    %s107 = sphi 0, %s91
  $region4: #{cnn_forward.3} parent=0 // loop_header_branch
    %12 = sbr.rel (%p10) target = $region8
  $region5: #{cnn_forward.3} parent=0 // loop_body
    %s14 = ssub.s32 %s9, 1
    %s15 = ssub.s32 %s9, 2
    %s16 = sadd.s32 %s9, 1
    %s17 = ssub.s32 %s9, %s16
    %p18 = scmp.eq.s32.totalorder %s17, 0
    %s20 = sadd.s32 %s19, 1
    %s21 = scalar_select %p18, %s19, %s20
    %p24 = pneg %p18
    %p25 = scmp.eq.s32.totalorder %s9, 1
    %p26 = por %p24, %p25
    %p27 = scmp.ne.s32.totalorder %s19, %s22
    %p28 = scmp.eq.s32.totalorder %s9, 0
    %p29 = por %p27, %p28
    %p30 = scmp.ne.s32.totalorder %s19, %s22
    %p31 = scmp.eq.s32.totalorder %s14, 1
    %p32 = por %p30, %p31
    %p33 = scmp.ne.s32.totalorder %s22, %s23
    %p34 = scmp.eq.s32.totalorder %s14, 0
    %p35 = por %p33, %p34
    %p36 = scmp.ne.s32.totalorder %s22, %s23
    %p37 = scmp.eq.s32.totalorder %s15, 1
    %p38 = por %p36, %p37
    %p40 = scmp.ne.s32.totalorder %s23, %s39
    %p41 = scmp.eq.s32.totalorder %s15, 0
    %p42 = por %p40, %p41
    %s44 = sadd.s32 %s43, 1
    %p47 = scmp.eq.s32.totalorder %s9, 1
    %p48 = scmp.ne.s32.totalorder %s43, %s45
    %p49 = scmp.eq.s32.totalorder %s9, 0
    %p50 = por %p48, %p49
    %p51 = scmp.ne.s32.totalorder %s43, %s45
    %p52 = scmp.eq.s32.totalorder %s14, 1
    %p53 = por %p51, %p52
    %p54 = scmp.ne.s32.totalorder %s45, %s46
    %p55 = scmp.eq.s32.totalorder %s14, 0
    %p56 = por %p54, %p55
    %p57 = scmp.ne.s32.totalorder %s45, %s46
    %p58 = scmp.eq.s32.totalorder %s15, 1
    %p59 = por %p57, %p58
    %p61 = scmp.ne.s32.totalorder %s46, %s60
    %p62 = scmp.eq.s32.totalorder %s15, 0
    %p63 = por %p61, %p62
    %s65 = sadd.s32 %s64, 1
    %p68 = scmp.eq.s32.totalorder %s9, 1
    %p69 = scmp.ne.s32.totalorder %s64, %s66
    %p70 = scmp.eq.s32.totalorder %s9, 0
    %p71 = por %p69, %p70
    %p72 = scmp.ne.s32.totalorder %s64, %s66
    %p73 = scmp.eq.s32.totalorder %s14, 1
    %p74 = por %p72, %p73
    %p75 = scmp.ne.s32.totalorder %s66, %s67
    %p76 = scmp.eq.s32.totalorder %s14, 0
    %p77 = por %p75, %p76
    %p78 = scmp.ne.s32.totalorder %s66, %s67
    %p79 = scmp.eq.s32.totalorder %s15, 1
    %p80 = por %p78, %p79
    %p82 = scmp.ne.s32.totalorder %s67, %s81
    %p83 = scmp.eq.s32.totalorder %s15, 0
    %p84 = por %p82, %p83
    %s85 = ssub.s32 %s9, %s16
    %p86 = scmp.eq.s32.totalorder %s85, 0
    %s88 = sadd.s32 %s87, 1
    %s89 = scalar_select %p86, %s87, %s88
    %p92 = pneg %p86
    %p93 = scmp.eq.s32.totalorder %s9, 1
    %p94 = por %p92, %p93
    %p95 = scmp.ne.s32.totalorder %s87, %s90
    %p96 = scmp.eq.s32.totalorder %s9, 0
    %p97 = por %p95, %p96
    %p98 = scmp.ne.s32.totalorder %s87, %s90
    %p99 = scmp.eq.s32.totalorder %s14, 1
    %p100 = por %p98, %p99
    %p101 = scmp.ne.s32.totalorder %s90, %s91
    %p102 = scmp.eq.s32.totalorder %s14, 0
    %p103 = por %p101, %p102
    %p104 = scmp.ne.s32.totalorder %s90, %s91
    %p105 = scmp.eq.s32.totalorder %s15, 1
    %p106 = por %p104, %p105
    %p108 = scmp.ne.s32.totalorder %s91, %s107
    %p109 = scmp.eq.s32.totalorder %s15, 0
    %p110 = por %p108, %p109
    %p111 = scmp.le.s32.totalorder 1, %s9
    %p112 = scmp.lt.s32.totalorder %s9, 3
    %p113 = pnand %p111, %p112
    %p114 = pneg %p113
    // Predicated region
    $region9: #{cnn_forward.3} parent=5 // pred_check
      _
    $region10: #{cnn_forward.3} parent=5 // pred_check_branch
      %116 = sbr.rel (%p113) target = $region12
    $region11: #{cnn_forward.3} parent=5 // pred_region
      %s117 = ssub.s32 %s9, 1
      // Predicated region
      $region13: #{cnn_forward.3} parent=11 // pred_check
        %p118 = pneg %p56
      $region14: #{cnn_forward.3} parent=11 // pred_check_branch
        %120 = sbr.rel (%p118) target = $region16
      $region15: #{cnn_forward.3} parent=11 // pred_region
        _
      $region16: #{cnn_forward.3} parent=11 // pred_fallthru
        _
      // Predicated region
      $region17: #{cnn_forward.3} parent=11 // pred_check
        %p121 = pneg %p77
      $region18: #{cnn_forward.3} parent=11 // pred_check_branch
        %123 = sbr.rel (%p121) target = $region20
      $region19: #{cnn_forward.3} parent=11 // pred_region
        _
      $region20: #{cnn_forward.3} parent=11 // pred_fallthru
        _
    $region12: #{cnn_forward.3} parent=5 // pred_fallthru
      _
    %p124 = scmp.lt.s32.totalorder %s9, 2
    // Predicated region
    $region21: #{cnn_forward.3} parent=5 // pred_check
      %p125 = pneg %p124
    $region22: #{cnn_forward.3} parent=5 // pred_check_branch
      %127 = sbr.rel (%p125) target = $region24
    $region23: #{cnn_forward.3} parent=5 // pred_region
      // Predicated region
      $region25: #{cnn_forward.3} parent=23 // pred_check
        %p128 = pneg %p29
      $region26: #{cnn_forward.3} parent=23 // pred_check_branch
        %130 = sbr.rel (%p128) target = $region28
      $region27: #{cnn_forward.3} parent=23 // pred_region
        %s131 = smul.u32 32, %s9
        %p132 = scmp.lt.s32.totalorder %s131, 63
        %s133 = scalar_select %p132, %s131, 63
        %s134 = smul.addr %s133, 2
        %s135 = smul.addr %s134, 8
        %s136 = scalar_lea.vmem %s0, %s135
        %s137 = smul.u32 32, %s9
      $region28: #{cnn_forward.3} parent=23 // pred_fallthru
        _
    $region24: #{cnn_forward.3} parent=5 // pred_fallthru
      _
    %p138 = scmp.le.s32.totalorder 1, %s9
    %p139 = scmp.lt.s32.totalorder %s9, 3
    %p140 = pnand %p138, %p139
    %p141 = pneg %p140
    // Predicated region
    $region29: #{cnn_forward.3} parent=5 // pred_check
      _
    $region30: #{cnn_forward.3} parent=5 // pred_check_branch
      %143 = sbr.rel (%p140) target = $region32
    $region31: #{cnn_forward.3} parent=5 // pred_region
      %s144 = ssub.s32 %s9, 1
      %s145 = smul.u32 32, %s14
      %p146 = scmp.lt.s32.totalorder %s145, 63
      %s147 = scalar_select %p146, %s145, 63
      %s148 = smul.addr %s147, 2
      %s149 = smul.addr %s148, 8
      %s150 = scalar_lea.vmem %s0, %s149
      %p151 = pneg %p35
      %p152 = pneg %p32
      %p153 = pneg %p56
      %p154 = pneg %p53
      %p155 = pneg %p77
      %p156 = pneg %p74
      %p157 = pneg %p103
      %p158 = pneg %p100
      %s159 = smul.u32 32, %s14
      %p160 = scmp.lt.s32.totalorder %s159, 63
      %s161 = scalar_select %p160, %s159, 63
      %s162 = smul.addr %s161, 8
      %s163 = scalar_lea.vmem %s3, %s162
      %s164 = smul.u32 32, %s14
      %p165 = scmp.lt.s32.totalorder %s164, 63
      %s166 = scalar_select %p165, %s164, 63
      %s167 = smul.addr %s166, 2
      %s168 = smul.addr %s167, 8
      %s169 = scalar_lea.vmem %s0, %s168
      %s170 = smul.u32 32, %s14
      %s171 = smul.u32 32, %s14
      %p172 = scmp.lt.s32.totalorder %s171, 63
      %s173 = scalar_select %p172, %s171, 63
      %s174 = smul.addr %s173, 8
      %s175 = scalar_lea.vmem %s3, %s174
      %s176 = smul.u32 32, %s14
      %v177 = vld [vmem:[%s169] sm:$0xff]
      %v178 = vld [vmem:[%s169 + $0x8] sm:$0xff]
      %v179 = vld [vmem:[%s169 + $0x10] sm:$0xff]
      %v180 = vld [vmem:[%s169 + $0x18] sm:$0xff]
      %v181 = vld [vmem:[%s169 + $0x20] sm:$0xff]
      %v182 = vld [vmem:[%s169 + $0x28] sm:$0xff]
      %v183 = vld [vmem:[%s169 + $0x30] sm:$0xff]
      %v184 = vld [vmem:[%s169 + $0x38] sm:$0xff]
      %v185 = vld [vmem:[%s169 + $0x40] sm:$0xff]
      %v186 = vld [vmem:[%s169 + $0x48] sm:$0xff]
      %v187 = vld [vmem:[%s169 + $0x50] sm:$0xff]
      %v188 = vld [vmem:[%s169 + $0x58] sm:$0xff]
      %v189 = vld [vmem:[%s169 + $0x60] sm:$0xff]
      %v190 = vld [vmem:[%s169 + $0x68] sm:$0xff]
      %v191 = vld [vmem:[%s169 + $0x70] sm:$0xff]
      %v192 = vld [vmem:[%s169 + $0x78] sm:$0xff]
      %v193 = vld [vmem:[%s169 + $0x80] sm:$0xff]
      %v194 = vld [vmem:[%s169 + $0x88] sm:$0xff]
      %v195 = vld [vmem:[%s169 + $0x90] sm:$0xff]
      %v196 = vld [vmem:[%s169 + $0x98] sm:$0xff]
      %v197 = vld [vmem:[%s169 + $0xa0] sm:$0xff]
      %v198 = vld [vmem:[%s169 + $0xa8] sm:$0xff]
      %v199 = vld [vmem:[%s169 + $0xb0] sm:$0xff]
      %v200 = vld [vmem:[%s169 + $0xb8] sm:$0xff]
      %v201 = vld [vmem:[%s169 + $0xc0] sm:$0xff]
      %v202 = vld [vmem:[%s169 + $0xc8] sm:$0xff]
      %v203 = vld [vmem:[%s169 + $0xd0] sm:$0xff]
      %v204 = vld [vmem:[%s169 + $0xd8] sm:$0xff]
      %v205 = vld [vmem:[%s169 + $0xe0] sm:$0xff]
      %v206 = vld [vmem:[%s169 + $0xe8] sm:$0xff]
      %v207 = vld [vmem:[%s169 + $0xf0] sm:$0xff]
      %v208 = vld [vmem:[%s169 + $0xf8] sm:$0xff]
      %v209 = vld [vmem:[%s169 + $0x100] sm:$0xff]
      %v210 = vld [vmem:[%s169 + $0x108] sm:$0xff]
      %v211 = vld [vmem:[%s169 + $0x110] sm:$0xff]
      %v212 = vld [vmem:[%s169 + $0x118] sm:$0xff]
      %v213 = vld [vmem:[%s169 + $0x120] sm:$0xff]
      %v214 = vld [vmem:[%s169 + $0x128] sm:$0xff]
      %v215 = vld [vmem:[%s169 + $0x130] sm:$0xff]
      %v216 = vld [vmem:[%s169 + $0x138] sm:$0xff]
      %v217 = vld [vmem:[%s169 + $0x140] sm:$0xff]
      %v218 = vld [vmem:[%s169 + $0x148] sm:$0xff]
      %v219 = vld [vmem:[%s169 + $0x150] sm:$0xff]
      %v220 = vld [vmem:[%s169 + $0x158] sm:$0xff]
      %v221 = vld [vmem:[%s169 + $0x160] sm:$0xff]
      %v222 = vld [vmem:[%s169 + $0x168] sm:$0xff]
      %v223 = vld [vmem:[%s169 + $0x170] sm:$0xff]
      %v224 = vld [vmem:[%s169 + $0x178] sm:$0xff]
      %v225 = vld [vmem:[%s169 + $0x180] sm:$0xff]
      %v226 = vld [vmem:[%s169 + $0x188] sm:$0xff]
      %v227 = vld [vmem:[%s169 + $0x190] sm:$0xff]
      %v228 = vld [vmem:[%s169 + $0x198] sm:$0xff]
      %v229 = vld [vmem:[%s169 + $0x1a0] sm:$0xff]
      %v230 = vld [vmem:[%s169 + $0x1a8] sm:$0xff]
      %v231 = vld [vmem:[%s169 + $0x1b0] sm:$0xff]
      %v232 = vld [vmem:[%s169 + $0x1b8] sm:$0xff]
      %v233 = vld [vmem:[%s169 + $0x1c0] sm:$0xff]
      %v234 = vld [vmem:[%s169 + $0x1c8] sm:$0xff]
      %v235 = vld [vmem:[%s169 + $0x1d0] sm:$0xff]
      %v236 = vld [vmem:[%s169 + $0x1d8] sm:$0xff]
      %v237 = vld [vmem:[%s169 + $0x1e0] sm:$0xff]
      %v238 = vld [vmem:[%s169 + $0x1e8] sm:$0xff]
      %v239 = vld [vmem:[%s169 + $0x1f0] sm:$0xff]
      %v240 = vld [vmem:[%s169 + $0x1f8] sm:$0xff]
      %v241 = vld [vmem:[%s1] sm:$0xff]
      %v242 = vld [vmem:[%s1 + $0x8] sm:$0xff]
      %v243 = vld [vmem:[%s1 + $0x10] sm:$0xff]
      %v244 = vld [vmem:[%s1 + $0x18] sm:$0xff]
      %v245 = vld [vmem:[%s1 + $0x20] sm:$0xff]
      %v246 = vld [vmem:[%s1 + $0x28] sm:$0xff]
      %v247 = vld [vmem:[%s1 + $0x30] sm:$0xff]
      %v248 = vld [vmem:[%s1 + $0x38] sm:$0xff]
      %v249 = vld [vmem:[%s1 + $0x40] sm:$0xff]
      %v250 = vld [vmem:[%s1 + $0x48] sm:$0xff]
      %v251 = vld [vmem:[%s1 + $0x50] sm:$0xff]
      %v252 = vld [vmem:[%s1 + $0x58] sm:$0xff]
      %v253 = vld [vmem:[%s1 + $0x60] sm:$0xff]
      %v254 = vld [vmem:[%s1 + $0x68] sm:$0xff]
      %v255 = vld [vmem:[%s1 + $0x70] sm:$0xff]
      %v256 = vld [vmem:[%s1 + $0x78] sm:$0xff]
      %v257 = vld [vmem:[%s1 + $0x80] sm:$0xff]
      %v258 = vld [vmem:[%s1 + $0x88] sm:$0xff]
      %v259 = vld [vmem:[%s1 + $0x90] sm:$0xff]
      %v260 = vld [vmem:[%s1 + $0x98] sm:$0xff]
      %v261 = vld [vmem:[%s1 + $0xa0] sm:$0xff]
      %v262 = vld [vmem:[%s1 + $0xa8] sm:$0xff]
      %v263 = vld [vmem:[%s1 + $0xb0] sm:$0xff]
      %v264 = vld [vmem:[%s1 + $0xb8] sm:$0xff]
      %vm265 = vcmask 523264
      %v267 = vsel %vm265, %v178, 0
      %v270 = vsel %vm265, %v180, 0
      %v273 = vsel %vm265, %v182, 0
      %v276 = vsel %vm265, %v184, 0
      %v279 = vsel %vm265, %v186, 0
      %v282 = vsel %vm265, %v188, 0
      %v285 = vsel %vm265, %v190, 0
      %v288 = vsel %vm265, %v192, 0
      %v291 = vsel %vm265, %v194, 0
      %v294 = vsel %vm265, %v196, 0
      %v297 = vsel %vm265, %v198, 0
      %v300 = vsel %vm265, %v200, 0
      %v303 = vsel %vm265, %v202, 0
      %v306 = vsel %vm265, %v204, 0
      %v309 = vsel %vm265, %v206, 0
      %v312 = vsel %vm265, %v208, 0
      %v315 = vsel %vm265, %v210, 0
      %v318 = vsel %vm265, %v212, 0
      %v321 = vsel %vm265, %v214, 0
      %v324 = vsel %vm265, %v216, 0
      %v327 = vsel %vm265, %v218, 0
      %v330 = vsel %vm265, %v220, 0
      %v333 = vsel %vm265, %v222, 0
      %v336 = vsel %vm265, %v224, 0
      %v339 = vsel %vm265, %v226, 0
      %v342 = vsel %vm265, %v228, 0
      %v345 = vsel %vm265, %v230, 0
      %v348 = vsel %vm265, %v232, 0
      %v351 = vsel %vm265, %v234, 0
      %v354 = vsel %vm265, %v236, 0
      %v357 = vsel %vm265, %v238, 0
      %v360 = vsel %vm265, %v240, 0
      %362 = vmatprep.subr.mxu0 0.0
      %363 = vmatpush1.msra.mxu0 %v241
      %364 = vmatprep.subr.mxu0 0.0
      %365 = vmatpush1.msra.mxu0 %v242
      %366 = vmatprep.subr.mxu0 0.0
      %367 = vmatpush1.msra.mxu0 %v243
      %368 = vmatprep.subr.mxu0 0.0
      %369 = vmatpush1.msra.mxu0 %v244
      %370 = vmatprep.subr.mxu0 0.0
      %371 = vmatpush1.msra.mxu0 %v245
      %372 = vmatprep.subr.mxu0 0.0
      %373 = vmatpush1.msra.mxu0 %v246
      %374 = vmatprep.subr.mxu0 0.0
      %375 = vmatpush1.msra.mxu0 %v247
      %376 = vmatprep.subr.mxu0 0.0
      %377 = vmatpush1.msra.mxu0 %v248
      %378 = vmatprep.subr.mxu0 0.0
      %379 = vmatpush1.msra.mxu0 %v249
      %380 = vmatprep.subr.mxu0 0.0
      %381 = vmatpush1.msra.mxu0 %v250
      %382 = vmatprep.subr.mxu0 0.0
      %383 = vmatpush1.msra.mxu0 %v251
      %384 = vmatprep.subr.mxu0 0.0
      %385 = vmatpush1.msra.mxu0 %v252
      %386 = vmatprep.subr.mxu0 0.0
      %387 = vmatpush1.msra.mxu0 %v253
      %388 = vmatprep.subr.mxu0 0.0
      %389 = vmatpush1.msra.mxu0 %v254
      %390 = vmatprep.subr.mxu0 0.0
      %391 = vmatpush1.msra.mxu0 %v255
      %392 = vmatprep.subr.mxu0 0.0
      %393 = vmatpush1.msra.mxu0 %v256
      %394 = vmatprep.subr.mxu0 0.0
      %395 = vmatpush1.msra.mxu0 %v257
      %396 = vmatprep.subr.mxu0 0.0
      %397 = vmatpush1.msra.mxu0 %v258
      %398 = vmatprep.subr.mxu0 0.0
      %399 = vmatpush1.msra.mxu0 %v259
      %400 = vmatprep.subr.mxu0 0.0
      %401 = vmatpush1.msra.mxu0 %v260
      %402 = vmatprep.subr.mxu0 0.0
      %403 = vmatpush1.msra.mxu0 %v261
      %404 = vmatprep.subr.mxu0 0.0
      %405 = vmatpush1.msra.mxu0 %v262
      %406 = vmatprep.subr.mxu0 0.0
      %407 = vmatpush1.msra.mxu0 %v263
      %408 = vmatprep.subr.mxu0 0.0
      %409 = vmatpush1.msra.mxu0 %v264
      %410 = vmatprep.subr.mxu0 0.0
      %411 = vmatpush1.msra.mxu0 0.0
      %412 = vmatprep.subr.mxu0 0.0
      %413 = vmatpush1.msra.mxu0 0.0
      %414 = vmatprep.subr.mxu0 0.0
      %415 = vmatpush1.msra.mxu0 0.0
      %416 = vmatprep.subr.mxu0 0.0
      %417 = vmatpush1.msra.mxu0 0.0
      %418 = vmatprep.subr.mxu0 0.0
      %419 = vmatpush1.msra.mxu0 0.0
      %420 = vmatprep.subr.mxu0 0.0
      %421 = vmatpush1.msra.mxu0 0.0
      %422 = vmatprep.subr.mxu0 0.0
      %423 = vmatpush1.msra.mxu0 0.0
      %424 = vmatprep.subr.mxu0 0.0
      %425 = vmatpush1.msra.mxu0 0.0
      %426 = vmatprep.mubr.f32.mxu0 %v267
      %427 = vmatmul.mubr.f32.gmra.mrb[0].mxu0 %v177
      %v428 = vpop.f32.mrb[0].mxu0
      %v429 = vadd.f32 0.0, %v428
      %v430 = vpop.f32.mrb[0].mxu0
      %431 = vmatprep.mubr.f32.mxu0 %v270
      %432 = vmatmul.mubr.f32.gmra.mrb[0].mxu0 %v179
      %v433 = vpop.f32.mrb[0].mxu0
      %v434 = vadd.f32 0.0, %v433
      %v435 = vpop.f32.mrb[0].mxu0
      %436 = vmatprep.mubr.f32.mxu0 %v273
      %437 = vmatmul.mubr.f32.gmra.mrb[0].mxu0 %v181
      %v438 = vpop.f32.mrb[0].mxu0
      %v439 = vadd.f32 0.0, %v438
      %v440 = vpop.f32.mrb[0].mxu0
      %441 = vmatprep.mubr.f32.mxu0 %v276
      %442 = vmatmul.mubr.f32.gmra.mrb[0].mxu0 %v183
      %v443 = vpop.f32.mrb[0].mxu0
      %v444 = vadd.f32 0.0, %v443
      %v445 = vpop.f32.mrb[0].mxu0
      %446 = vmatprep.mubr.f32.mxu0 %v279
      %447 = vmatmul.mubr.f32.gmra.mrb[0].mxu0 %v185
      %v448 = vpop.f32.mrb[0].mxu0
      %v449 = vadd.f32 0.0, %v448
      %v450 = vpop.f32.mrb[0].mxu0
      %451 = vmatprep.mubr.f32.mxu0 %v282
      %452 = vmatmul.mubr.f32.gmra.mrb[0].mxu0 %v187
      %v453 = vpop.f32.mrb[0].mxu0
      %v454 = vadd.f32 0.0, %v453
      %v455 = vpop.f32.mrb[0].mxu0
      %456 = vmatprep.mubr.f32.mxu0 %v285
      %457 = vmatmul.mubr.f32.gmra.mrb[0].mxu0 %v189
      %v458 = vpop.f32.mrb[0].mxu0
      %v459 = vadd.f32 0.0, %v458
      %v460 = vpop.f32.mrb[0].mxu0
      %461 = vmatprep.mubr.f32.mxu0 %v288
      %462 = vmatmul.mubr.f32.gmra.mrb[0].mxu0 %v191
      %v463 = vpop.f32.mrb[0].mxu0
      %v464 = vadd.f32 0.0, %v463
      %v465 = vpop.f32.mrb[0].mxu0
      %466 = vmatprep.mubr.f32.mxu0 %v291
      %467 = vmatmul.mubr.f32.gmra.mrb[0].mxu0 %v193
      %v468 = vpop.f32.mrb[0].mxu0
      %v469 = vadd.f32 0.0, %v468
      %v470 = vpop.f32.mrb[0].mxu0
      %471 = vmatprep.mubr.f32.mxu0 %v294
      %472 = vmatmul.mubr.f32.gmra.mrb[0].mxu0 %v195
      %v473 = vpop.f32.mrb[0].mxu0
      %v474 = vadd.f32 0.0, %v473
      %v475 = vpop.f32.mrb[0].mxu0
      %476 = vmatprep.mubr.f32.mxu0 %v297
      %477 = vmatmul.mubr.f32.gmra.mrb[0].mxu0 %v197
      %v478 = vpop.f32.mrb[0].mxu0
      %v479 = vadd.f32 0.0, %v478
      %v480 = vpop.f32.mrb[0].mxu0
      %481 = vmatprep.mubr.f32.mxu0 %v300
      %482 = vmatmul.mubr.f32.gmra.mrb[0].mxu0 %v199
      %v483 = vpop.f32.mrb[0].mxu0
      %v484 = vadd.f32 0.0, %v483
      %v485 = vpop.f32.mrb[0].mxu0
      %486 = vmatprep.mubr.f32.mxu0 %v303
      %487 = vmatmul.mubr.f32.gmra.mrb[0].mxu0 %v201
      %v488 = vpop.f32.mrb[0].mxu0
      %v489 = vadd.f32 0.0, %v488
      %v490 = vpop.f32.mrb[0].mxu0
      %491 = vmatprep.mubr.f32.mxu0 %v306
      %492 = vmatmul.mubr.f32.gmra.mrb[0].mxu0 %v203
      %v493 = vpop.f32.mrb[0].mxu0
      %v494 = vadd.f32 0.0, %v493
      %v495 = vpop.f32.mrb[0].mxu0
      %496 = vmatprep.mubr.f32.mxu0 %v309
      %497 = vmatmul.mubr.f32.gmra.mrb[0].mxu0 %v205
      %v498 = vpop.f32.mrb[0].mxu0
      %v499 = vadd.f32 0.0, %v498
      %v500 = vpop.f32.mrb[0].mxu0
      %501 = vmatprep.mubr.f32.mxu0 %v312
      %502 = vmatmul.mubr.f32.gmra.mrb[0].mxu0 %v207
      %v503 = vpop.f32.mrb[0].mxu0
      %v504 = vadd.f32 0.0, %v503
      %v505 = vpop.f32.mrb[0].mxu0
      %506 = vmatprep.mubr.f32.mxu0 %v315
      %507 = vmatmul.mubr.f32.gmra.mrb[0].mxu0 %v209
      %v508 = vpop.f32.mrb[0].mxu0
      %v509 = vadd.f32 0.0, %v508
      %v510 = vpop.f32.mrb[0].mxu0
      %511 = vmatprep.mubr.f32.mxu0 %v318
      %512 = vmatmul.mubr.f32.gmra.mrb[0].mxu0 %v211
      %v513 = vpop.f32.mrb[0].mxu0
      %v514 = vadd.f32 0.0, %v513
      %v515 = vpop.f32.mrb[0].mxu0
      %516 = vmatprep.mubr.f32.mxu0 %v321
      %517 = vmatmul.mubr.f32.gmra.mrb[0].mxu0 %v213
      %v518 = vpop.f32.mrb[0].mxu0
      %v519 = vadd.f32 0.0, %v518
      %v520 = vpop.f32.mrb[0].mxu0
      %521 = vmatprep.mubr.f32.mxu0 %v324
      %522 = vmatmul.mubr.f32.gmra.mrb[0].mxu0 %v215
      %v523 = vpop.f32.mrb[0].mxu0
      %v524 = vadd.f32 0.0, %v523
      %v525 = vpop.f32.mrb[0].mxu0
      %526 = vmatprep.mubr.f32.mxu0 %v327
      %527 = vmatmul.mubr.f32.gmra.mrb[0].mxu0 %v217
      %v528 = vpop.f32.mrb[0].mxu0
      %v529 = vadd.f32 0.0, %v528
      %v530 = vpop.f32.mrb[0].mxu0
      %531 = vmatprep.mubr.f32.mxu0 %v330
      %532 = vmatmul.mubr.f32.gmra.mrb[0].mxu0 %v219
      %v533 = vpop.f32.mrb[0].mxu0
      %v534 = vadd.f32 0.0, %v533
      %v535 = vpop.f32.mrb[0].mxu0
      %536 = vmatprep.mubr.f32.mxu0 %v333
      %537 = vmatmul.mubr.f32.gmra.mrb[0].mxu0 %v221
      %v538 = vpop.f32.mrb[0].mxu0
      %v539 = vadd.f32 0.0, %v538
      %v540 = vpop.f32.mrb[0].mxu0
      %541 = vmatprep.mubr.f32.mxu0 %v336
      %542 = vmatmul.mubr.f32.gmra.mrb[0].mxu0 %v223
      %v543 = vpop.f32.mrb[0].mxu0
      %v544 = vadd.f32 0.0, %v543
      %v545 = vpop.f32.mrb[0].mxu0
      %546 = vmatprep.mubr.f32.mxu0 %v339
      %547 = vmatmul.mubr.f32.gmra.mrb[0].mxu0 %v225
      %v548 = vpop.f32.mrb[0].mxu0
      %v549 = vadd.f32 0.0, %v548
      %v550 = vpop.f32.mrb[0].mxu0
      %551 = vmatprep.mubr.f32.mxu0 %v342
      %552 = vmatmul.mubr.f32.gmra.mrb[0].mxu0 %v227
      %v553 = vpop.f32.mrb[0].mxu0
      %v554 = vadd.f32 0.0, %v553
      %v555 = vpop.f32.mrb[0].mxu0
      %556 = vmatprep.mubr.f32.mxu0 %v345
      %557 = vmatmul.mubr.f32.gmra.mrb[0].mxu0 %v229
      %v558 = vpop.f32.mrb[0].mxu0
      %v559 = vadd.f32 0.0, %v558
      %v560 = vpop.f32.mrb[0].mxu0
      %561 = vmatprep.mubr.f32.mxu0 %v348
      %562 = vmatmul.mubr.f32.gmra.mrb[0].mxu0 %v231
      %v563 = vpop.f32.mrb[0].mxu0
      %v564 = vadd.f32 0.0, %v563
      %v565 = vpop.f32.mrb[0].mxu0
      %566 = vmatprep.mubr.f32.mxu0 %v351
      %567 = vmatmul.mubr.f32.gmra.mrb[0].mxu0 %v233
      %v568 = vpop.f32.mrb[0].mxu0
      %v569 = vadd.f32 0.0, %v568
      %v570 = vpop.f32.mrb[0].mxu0
      %571 = vmatprep.mubr.f32.mxu0 %v354
      %572 = vmatmul.mubr.f32.gmra.mrb[0].mxu0 %v235
      %v573 = vpop.f32.mrb[0].mxu0
      %v574 = vadd.f32 0.0, %v573
      %v575 = vpop.f32.mrb[0].mxu0
      %576 = vmatprep.mubr.f32.mxu0 %v357
      %577 = vmatmul.mubr.f32.gmra.mrb[0].mxu0 %v237
      %v578 = vpop.f32.mrb[0].mxu0
      %v579 = vadd.f32 0.0, %v578
      %v580 = vpop.f32.mrb[0].mxu0
      %581 = vmatprep.mubr.f32.mxu0 %v360
      %582 = vmatmul.mubr.f32.gmra.mrb[0].mxu0 %v239
      %v583 = vpop.f32.mrb[0].mxu0
      %v584 = vadd.f32 0.0, %v583
      %v585 = vpop.f32.mrb[0].mxu0
      %586 = vdwg.mxu0
      %619 = vrot.lane.b32.xlu0 %v429, 96
      %v620 = vpop.permute.xlu0 %619
      %621 = vrot.lane.b32.xlu0 %v434, 96
      %v622 = vpop.permute.xlu0 %621
      %623 = vrot.lane.b32.xlu0 %v439, 96
      %v624 = vpop.permute.xlu0 %623
      %625 = vrot.lane.b32.xlu0 %v444, 96
      %v626 = vpop.permute.xlu0 %625
      %627 = vrot.lane.b32.xlu0 %v449, 96
      %v628 = vpop.permute.xlu0 %627
      %629 = vrot.lane.b32.xlu0 %v454, 96
      %v630 = vpop.permute.xlu0 %629
      %631 = vrot.lane.b32.xlu0 %v459, 96
      %v632 = vpop.permute.xlu0 %631
      %633 = vrot.lane.b32.xlu0 %v464, 96
      %v634 = vpop.permute.xlu0 %633
      %635 = vrot.lane.b32.xlu0 %v469, 96
      %v636 = vpop.permute.xlu0 %635
      %637 = vrot.lane.b32.xlu0 %v474, 96
      %v638 = vpop.permute.xlu0 %637
      %639 = vrot.lane.b32.xlu0 %v479, 96
      %v640 = vpop.permute.xlu0 %639
      %641 = vrot.lane.b32.xlu0 %v484, 96
      %v642 = vpop.permute.xlu0 %641
      %643 = vrot.lane.b32.xlu0 %v489, 96
      %v644 = vpop.permute.xlu0 %643
      %645 = vrot.lane.b32.xlu0 %v494, 96
      %v646 = vpop.permute.xlu0 %645
      %647 = vrot.lane.b32.xlu0 %v499, 96
      %v648 = vpop.permute.xlu0 %647
      %649 = vrot.lane.b32.xlu0 %v504, 96
      %v650 = vpop.permute.xlu0 %649
      %651 = vrot.lane.b32.xlu0 %v509, 96
      %v652 = vpop.permute.xlu0 %651
      %653 = vrot.lane.b32.xlu0 %v514, 96
      %v654 = vpop.permute.xlu0 %653
      %655 = vrot.lane.b32.xlu0 %v519, 96
      %v656 = vpop.permute.xlu0 %655
      %657 = vrot.lane.b32.xlu0 %v524, 96
      %v658 = vpop.permute.xlu0 %657
      %659 = vrot.lane.b32.xlu0 %v529, 96
      %v660 = vpop.permute.xlu0 %659
      %661 = vrot.lane.b32.xlu0 %v534, 96
      %v662 = vpop.permute.xlu0 %661
      %663 = vrot.lane.b32.xlu0 %v539, 96
      %v664 = vpop.permute.xlu0 %663
      %665 = vrot.lane.b32.xlu0 %v544, 96
      %v666 = vpop.permute.xlu0 %665
      %667 = vrot.lane.b32.xlu0 %v549, 96
      %v668 = vpop.permute.xlu0 %667
      %669 = vrot.lane.b32.xlu0 %v554, 96
      %v670 = vpop.permute.xlu0 %669
      %671 = vrot.lane.b32.xlu0 %v559, 96
      %v672 = vpop.permute.xlu0 %671
      %673 = vrot.lane.b32.xlu0 %v564, 96
      %v674 = vpop.permute.xlu0 %673
      %675 = vrot.lane.b32.xlu0 %v569, 96
      %v676 = vpop.permute.xlu0 %675
      %677 = vrot.lane.b32.xlu0 %v574, 96
      %v678 = vpop.permute.xlu0 %677
      %679 = vrot.lane.b32.xlu0 %v579, 96
      %v680 = vpop.permute.xlu0 %679
      %681 = vrot.lane.b32.xlu0 %v584, 96
      %v682 = vpop.permute.xlu0 %681
      %v715 = vmax.f32 %v429, %v620
      %v716 = vmax.f32 %v434, %v622
      %v717 = vmax.f32 %v439, %v624
      %v718 = vmax.f32 %v444, %v626
      %v719 = vmax.f32 %v449, %v628
      %v720 = vmax.f32 %v454, %v630
      %v721 = vmax.f32 %v459, %v632
      %v722 = vmax.f32 %v464, %v634
      %v723 = vmax.f32 %v469, %v636
      %v724 = vmax.f32 %v474, %v638
      %v725 = vmax.f32 %v479, %v640
      %v726 = vmax.f32 %v484, %v642
      %v727 = vmax.f32 %v489, %v644
      %v728 = vmax.f32 %v494, %v646
      %v729 = vmax.f32 %v499, %v648
      %v730 = vmax.f32 %v504, %v650
      %v731 = vmax.f32 %v509, %v652
      %v732 = vmax.f32 %v514, %v654
      %v733 = vmax.f32 %v519, %v656
      %v734 = vmax.f32 %v524, %v658
      %v735 = vmax.f32 %v529, %v660
      %v736 = vmax.f32 %v534, %v662
      %v737 = vmax.f32 %v539, %v664
      %v738 = vmax.f32 %v544, %v666
      %v739 = vmax.f32 %v549, %v668
      %v740 = vmax.f32 %v554, %v670
      %v741 = vmax.f32 %v559, %v672
      %v742 = vmax.f32 %v564, %v674
      %v743 = vmax.f32 %v569, %v676
      %v744 = vmax.f32 %v574, %v678
      %v745 = vmax.f32 %v579, %v680
      %v746 = vmax.f32 %v584, %v682
      %747 = vrot.lane.b32.xlu0 %v429, 64
      %v748 = vpop.permute.xlu0 %747
      %749 = vrot.lane.b32.xlu0 %v434, 64
      %v750 = vpop.permute.xlu0 %749
      %751 = vrot.lane.b32.xlu0 %v439, 64
      %v752 = vpop.permute.xlu0 %751
      %753 = vrot.lane.b32.xlu0 %v444, 64
      %v754 = vpop.permute.xlu0 %753
      %755 = vrot.lane.b32.xlu0 %v449, 64
      %v756 = vpop.permute.xlu0 %755
      %757 = vrot.lane.b32.xlu0 %v454, 64
      %v758 = vpop.permute.xlu0 %757
      %759 = vrot.lane.b32.xlu0 %v459, 64
      %v760 = vpop.permute.xlu0 %759
      %761 = vrot.lane.b32.xlu0 %v464, 64
      %v762 = vpop.permute.xlu0 %761
      %763 = vrot.lane.b32.xlu0 %v469, 64
      %v764 = vpop.permute.xlu0 %763
      %765 = vrot.lane.b32.xlu0 %v474, 64
      %v766 = vpop.permute.xlu0 %765
      %767 = vrot.lane.b32.xlu0 %v479, 64
      %v768 = vpop.permute.xlu0 %767
      %769 = vrot.lane.b32.xlu0 %v484, 64
      %v770 = vpop.permute.xlu0 %769
      %771 = vrot.lane.b32.xlu0 %v489, 64
      %v772 = vpop.permute.xlu0 %771
      %773 = vrot.lane.b32.xlu0 %v494, 64
      %v774 = vpop.permute.xlu0 %773
      %775 = vrot.lane.b32.xlu0 %v499, 64
      %v776 = vpop.permute.xlu0 %775
      %777 = vrot.lane.b32.xlu0 %v504, 64
      %v778 = vpop.permute.xlu0 %777
      %779 = vrot.lane.b32.xlu0 %v509, 64
      %v780 = vpop.permute.xlu0 %779
      %781 = vrot.lane.b32.xlu0 %v514, 64
      %v782 = vpop.permute.xlu0 %781
      %783 = vrot.lane.b32.xlu0 %v519, 64
      %v784 = vpop.permute.xlu0 %783
      %785 = vrot.lane.b32.xlu0 %v524, 64
      %v786 = vpop.permute.xlu0 %785
      %787 = vrot.lane.b32.xlu0 %v529, 64
      %v788 = vpop.permute.xlu0 %787
      %789 = vrot.lane.b32.xlu0 %v534, 64
      %v790 = vpop.permute.xlu0 %789
      %791 = vrot.lane.b32.xlu0 %v539, 64
      %v792 = vpop.permute.xlu0 %791
      %793 = vrot.lane.b32.xlu0 %v544, 64
      %v794 = vpop.permute.xlu0 %793
      %795 = vrot.lane.b32.xlu0 %v549, 64
      %v796 = vpop.permute.xlu0 %795
      %797 = vrot.lane.b32.xlu0 %v554, 64
      %v798 = vpop.permute.xlu0 %797
      %799 = vrot.lane.b32.xlu0 %v559, 64
      %v800 = vpop.permute.xlu0 %799
      %801 = vrot.lane.b32.xlu0 %v564, 64
      %v802 = vpop.permute.xlu0 %801
      %803 = vrot.lane.b32.xlu0 %v569, 64
      %v804 = vpop.permute.xlu0 %803
      %805 = vrot.lane.b32.xlu0 %v574, 64
      %v806 = vpop.permute.xlu0 %805
      %807 = vrot.lane.b32.xlu0 %v579, 64
      %v808 = vpop.permute.xlu0 %807
      %809 = vrot.lane.b32.xlu0 %v584, 64
      %v810 = vpop.permute.xlu0 %809
      %v843 = vmax.f32 %v715, %v748
      %v844 = vmax.f32 %v716, %v750
      %v845 = vmax.f32 %v717, %v752
      %v846 = vmax.f32 %v718, %v754
      %v847 = vmax.f32 %v719, %v756
      %v848 = vmax.f32 %v720, %v758
      %v849 = vmax.f32 %v721, %v760
      %v850 = vmax.f32 %v722, %v762
      %v851 = vmax.f32 %v723, %v764
      %v852 = vmax.f32 %v724, %v766
      %v853 = vmax.f32 %v725, %v768
      %v854 = vmax.f32 %v726, %v770
      %v855 = vmax.f32 %v727, %v772
      %v856 = vmax.f32 %v728, %v774
      %v857 = vmax.f32 %v729, %v776
      %v858 = vmax.f32 %v730, %v778
      %v859 = vmax.f32 %v731, %v780
      %v860 = vmax.f32 %v732, %v782
      %v861 = vmax.f32 %v733, %v784
      %v862 = vmax.f32 %v734, %v786
      %v863 = vmax.f32 %v735, %v788
      %v864 = vmax.f32 %v736, %v790
      %v865 = vmax.f32 %v737, %v792
      %v866 = vmax.f32 %v738, %v794
      %v867 = vmax.f32 %v739, %v796
      %v868 = vmax.f32 %v740, %v798
      %v869 = vmax.f32 %v741, %v800
      %v870 = vmax.f32 %v742, %v802
      %v871 = vmax.f32 %v743, %v804
      %v872 = vmax.f32 %v744, %v806
      %v873 = vmax.f32 %v745, %v808
      %v874 = vmax.f32 %v746, %v810
      %875 = vrot.lane.b32.xlu0 %v429, 32
      %v876 = vpop.permute.xlu0 %875
      %877 = vrot.lane.b32.xlu0 %v434, 32
      %v878 = vpop.permute.xlu0 %877
      %879 = vrot.lane.b32.xlu0 %v439, 32
      %v880 = vpop.permute.xlu0 %879
      %881 = vrot.lane.b32.xlu0 %v444, 32
      %v882 = vpop.permute.xlu0 %881
      %883 = vrot.lane.b32.xlu0 %v449, 32
      %v884 = vpop.permute.xlu0 %883
      %885 = vrot.lane.b32.xlu0 %v454, 32
      %v886 = vpop.permute.xlu0 %885
      %887 = vrot.lane.b32.xlu0 %v459, 32
      %v888 = vpop.permute.xlu0 %887
      %889 = vrot.lane.b32.xlu0 %v464, 32
      %v890 = vpop.permute.xlu0 %889
      %891 = vrot.lane.b32.xlu0 %v469, 32
      %v892 = vpop.permute.xlu0 %891
      %893 = vrot.lane.b32.xlu0 %v474, 32
      %v894 = vpop.permute.xlu0 %893
      %895 = vrot.lane.b32.xlu0 %v479, 32
      %v896 = vpop.permute.xlu0 %895
      %897 = vrot.lane.b32.xlu0 %v484, 32
      %v898 = vpop.permute.xlu0 %897
      %899 = vrot.lane.b32.xlu0 %v489, 32
      %v900 = vpop.permute.xlu0 %899
      %901 = vrot.lane.b32.xlu0 %v494, 32
      %v902 = vpop.permute.xlu0 %901
      %903 = vrot.lane.b32.xlu0 %v499, 32
      %v904 = vpop.permute.xlu0 %903
      %905 = vrot.lane.b32.xlu0 %v504, 32
      %v906 = vpop.permute.xlu0 %905
      %907 = vrot.lane.b32.xlu0 %v509, 32
      %v908 = vpop.permute.xlu0 %907
      %909 = vrot.lane.b32.xlu0 %v514, 32
      %v910 = vpop.permute.xlu0 %909
      %911 = vrot.lane.b32.xlu0 %v519, 32
      %v912 = vpop.permute.xlu0 %911
      %913 = vrot.lane.b32.xlu0 %v524, 32
      %v914 = vpop.permute.xlu0 %913
      %915 = vrot.lane.b32.xlu0 %v529, 32
      %v916 = vpop.permute.xlu0 %915
      %917 = vrot.lane.b32.xlu0 %v534, 32
      %v918 = vpop.permute.xlu0 %917
      %919 = vrot.lane.b32.xlu0 %v539, 32
      %v920 = vpop.permute.xlu0 %919
      %921 = vrot.lane.b32.xlu0 %v544, 32
      %v922 = vpop.permute.xlu0 %921
      %923 = vrot.lane.b32.xlu0 %v549, 32
      %v924 = vpop.permute.xlu0 %923
      %925 = vrot.lane.b32.xlu0 %v554, 32
      %v926 = vpop.permute.xlu0 %925
      %927 = vrot.lane.b32.xlu0 %v559, 32
      %v928 = vpop.permute.xlu0 %927
      %929 = vrot.lane.b32.xlu0 %v564, 32
      %v930 = vpop.permute.xlu0 %929
      %931 = vrot.lane.b32.xlu0 %v569, 32
      %v932 = vpop.permute.xlu0 %931
      %933 = vrot.lane.b32.xlu0 %v574, 32
      %v934 = vpop.permute.xlu0 %933
      %935 = vrot.lane.b32.xlu0 %v579, 32
      %v936 = vpop.permute.xlu0 %935
      %937 = vrot.lane.b32.xlu0 %v584, 32
      %v938 = vpop.permute.xlu0 %937
      %v971 = vmax.f32 %v843, %v876
      %v972 = vmax.f32 %v844, %v878
      %v973 = vmax.f32 %v845, %v880
      %v974 = vmax.f32 %v846, %v882
      %v975 = vmax.f32 %v847, %v884
      %v976 = vmax.f32 %v848, %v886
      %v977 = vmax.f32 %v849, %v888
      %v978 = vmax.f32 %v850, %v890
      %v979 = vmax.f32 %v851, %v892
      %v980 = vmax.f32 %v852, %v894
      %v981 = vmax.f32 %v853, %v896
      %v982 = vmax.f32 %v854, %v898
      %v983 = vmax.f32 %v855, %v900
      %v984 = vmax.f32 %v856, %v902
      %v985 = vmax.f32 %v857, %v904
      %v986 = vmax.f32 %v858, %v906
      %v987 = vmax.f32 %v859, %v908
      %v988 = vmax.f32 %v860, %v910
      %v989 = vmax.f32 %v861, %v912
      %v990 = vmax.f32 %v862, %v914
      %v991 = vmax.f32 %v863, %v916
      %v992 = vmax.f32 %v864, %v918
      %v993 = vmax.f32 %v865, %v920
      %v994 = vmax.f32 %v866, %v922
      %v995 = vmax.f32 %v867, %v924
      %v996 = vmax.f32 %v868, %v926
      %v997 = vmax.f32 %v869, %v928
      %v998 = vmax.f32 %v870, %v930
      %v999 = vmax.f32 %v871, %v932
      %v1000 = vmax.f32 %v872, %v934
      %v1001 = vmax.f32 %v873, %v936
      %v1002 = vmax.f32 %v874, %v938
      %v1003 = vld [vmem:[%s2] sm:$0x1]
      %v1005 = vlaneseq
      %v1006 = vshrl.u32 %v1005, 7
      %v1007 = vsub.s32 0, %v1006
      %v1008 = vrot.slane %v1003, %v1007
      %v1010 = vadd.f32 %v971, %v1008
      %v1011 = vadd.f32 %v972, %v1008
      %v1012 = vadd.f32 %v973, %v1008
      %v1013 = vadd.f32 %v974, %v1008
      %v1014 = vadd.f32 %v975, %v1008
      %v1015 = vadd.f32 %v976, %v1008
      %v1016 = vadd.f32 %v977, %v1008
      %v1017 = vadd.f32 %v978, %v1008
      %v1018 = vadd.f32 %v979, %v1008
      %v1019 = vadd.f32 %v980, %v1008
      %v1020 = vadd.f32 %v981, %v1008
      %v1021 = vadd.f32 %v982, %v1008
      %v1022 = vadd.f32 %v983, %v1008
      %v1023 = vadd.f32 %v984, %v1008
      %v1024 = vadd.f32 %v985, %v1008
      %v1025 = vadd.f32 %v986, %v1008
      %v1026 = vadd.f32 %v987, %v1008
      %v1027 = vadd.f32 %v988, %v1008
      %v1028 = vadd.f32 %v989, %v1008
      %v1029 = vadd.f32 %v990, %v1008
      %v1030 = vadd.f32 %v991, %v1008
      %v1031 = vadd.f32 %v992, %v1008
      %v1032 = vadd.f32 %v993, %v1008
      %v1033 = vadd.f32 %v994, %v1008
      %v1034 = vadd.f32 %v995, %v1008
      %v1035 = vadd.f32 %v996, %v1008
      %v1036 = vadd.f32 %v997, %v1008
      %v1037 = vadd.f32 %v998, %v1008
      %v1038 = vadd.f32 %v999, %v1008
      %v1039 = vadd.f32 %v1000, %v1008
      %v1040 = vadd.f32 %v1001, %v1008
      %v1041 = vadd.f32 %v1002, %v1008
      %v1042 = vmax.f32 %v1010, 0.0
      %v1043 = vmax.f32 %v1011, 0.0
      %v1044 = vmax.f32 %v1012, 0.0
      %v1045 = vmax.f32 %v1013, 0.0
      %v1046 = vmax.f32 %v1014, 0.0
      %v1047 = vmax.f32 %v1015, 0.0
      %v1048 = vmax.f32 %v1016, 0.0
      %v1049 = vmax.f32 %v1017, 0.0
      %v1050 = vmax.f32 %v1018, 0.0
      %v1051 = vmax.f32 %v1019, 0.0
      %v1052 = vmax.f32 %v1020, 0.0
      %v1053 = vmax.f32 %v1021, 0.0
      %v1054 = vmax.f32 %v1022, 0.0
      %v1055 = vmax.f32 %v1023, 0.0
      %v1056 = vmax.f32 %v1024, 0.0
      %v1057 = vmax.f32 %v1025, 0.0
      %v1058 = vmax.f32 %v1026, 0.0
      %v1059 = vmax.f32 %v1027, 0.0
      %v1060 = vmax.f32 %v1028, 0.0
      %v1061 = vmax.f32 %v1029, 0.0
      %v1062 = vmax.f32 %v1030, 0.0
      %v1063 = vmax.f32 %v1031, 0.0
      %v1064 = vmax.f32 %v1032, 0.0
      %v1065 = vmax.f32 %v1033, 0.0
      %v1066 = vmax.f32 %v1034, 0.0
      %v1067 = vmax.f32 %v1035, 0.0
      %v1068 = vmax.f32 %v1036, 0.0
      %v1069 = vmax.f32 %v1037, 0.0
      %v1070 = vmax.f32 %v1038, 0.0
      %v1071 = vmax.f32 %v1039, 0.0
      %v1072 = vmax.f32 %v1040, 0.0
      %v1073 = vmax.f32 %v1041, 0.0
      %vm1074 = vcmask 261120
      %1075 = vst.msk [vmem:[%s175] sm:$0xff] %vm1074, %v1042
      %1076 = vst.msk [vmem:[%s175 + $0x8] sm:$0xff] %vm1074, %v1043
      %1077 = vst.msk [vmem:[%s175 + $0x10] sm:$0xff] %vm1074, %v1044
      %1078 = vst.msk [vmem:[%s175 + $0x18] sm:$0xff] %vm1074, %v1045
      %1079 = vst.msk [vmem:[%s175 + $0x20] sm:$0xff] %vm1074, %v1046
      %1080 = vst.msk [vmem:[%s175 + $0x28] sm:$0xff] %vm1074, %v1047
      %1081 = vst.msk [vmem:[%s175 + $0x30] sm:$0xff] %vm1074, %v1048
      %1082 = vst.msk [vmem:[%s175 + $0x38] sm:$0xff] %vm1074, %v1049
      %1083 = vst.msk [vmem:[%s175 + $0x40] sm:$0xff] %vm1074, %v1050
      %1084 = vst.msk [vmem:[%s175 + $0x48] sm:$0xff] %vm1074, %v1051
      %1085 = vst.msk [vmem:[%s175 + $0x50] sm:$0xff] %vm1074, %v1052
      %1086 = vst.msk [vmem:[%s175 + $0x58] sm:$0xff] %vm1074, %v1053
      %1087 = vst.msk [vmem:[%s175 + $0x60] sm:$0xff] %vm1074, %v1054
      %1088 = vst.msk [vmem:[%s175 + $0x68] sm:$0xff] %vm1074, %v1055
      %1089 = vst.msk [vmem:[%s175 + $0x70] sm:$0xff] %vm1074, %v1056
      %1090 = vst.msk [vmem:[%s175 + $0x78] sm:$0xff] %vm1074, %v1057
      %1091 = vst.msk [vmem:[%s175 + $0x80] sm:$0xff] %vm1074, %v1058
      %1092 = vst.msk [vmem:[%s175 + $0x88] sm:$0xff] %vm1074, %v1059
      %1093 = vst.msk [vmem:[%s175 + $0x90] sm:$0xff] %vm1074, %v1060
      %1094 = vst.msk [vmem:[%s175 + $0x98] sm:$0xff] %vm1074, %v1061
      %1095 = vst.msk [vmem:[%s175 + $0xa0] sm:$0xff] %vm1074, %v1062
      %1096 = vst.msk [vmem:[%s175 + $0xa8] sm:$0xff] %vm1074, %v1063
      %1097 = vst.msk [vmem:[%s175 + $0xb0] sm:$0xff] %vm1074, %v1064
      %1098 = vst.msk [vmem:[%s175 + $0xb8] sm:$0xff] %vm1074, %v1065
      %1099 = vst.msk [vmem:[%s175 + $0xc0] sm:$0xff] %vm1074, %v1066
      %1100 = vst.msk [vmem:[%s175 + $0xc8] sm:$0xff] %vm1074, %v1067
      %1101 = vst.msk [vmem:[%s175 + $0xd0] sm:$0xff] %vm1074, %v1068
      %1102 = vst.msk [vmem:[%s175 + $0xd8] sm:$0xff] %vm1074, %v1069
      %1103 = vst.msk [vmem:[%s175 + $0xe0] sm:$0xff] %vm1074, %v1070
      %1104 = vst.msk [vmem:[%s175 + $0xe8] sm:$0xff] %vm1074, %v1071
      %1105 = vst.msk [vmem:[%s175 + $0xf0] sm:$0xff] %vm1074, %v1072
      %1106 = vst.msk [vmem:[%s175 + $0xf8] sm:$0xff] %vm1074, %v1073
      %s1107 = smul.u32 32, %s14
      %p1108 = scmp.lt.s32.totalorder %s1107, 63
      %s1109 = scalar_select %p1108, %s1107, 63
      %s1110 = smul.addr %s1109, 8
      %s1111 = scalar_lea.vmem %s3, %s1110
      // Predicated region
      $region33: #{cnn_forward.3} parent=31 // pred_check
        %p1112 = pneg %p100
      $region34: #{cnn_forward.3} parent=31 // pred_check_branch
        %1114 = sbr.rel (%p1112) target = $region36
      $region35: #{cnn_forward.3} parent=31 // pred_region
        %s1115 = smul.u32 32, %s14
      $region36: #{cnn_forward.3} parent=31 // pred_fallthru
        _
    $region32: #{cnn_forward.3} parent=5 // pred_fallthru
      _
    %p1116 = scmp.le.s32.totalorder 2, %s9
    // Predicated region
    $region37: #{cnn_forward.3} parent=5 // pred_check
      %p1117 = pneg %p1116
    $region38: #{cnn_forward.3} parent=5 // pred_check_branch
      %1119 = sbr.rel (%p1117) target = $region40
    $region39: #{cnn_forward.3} parent=5 // pred_region
      %s1120 = ssub.s32 %s9, 2
      // Predicated region
      $region41: #{cnn_forward.3} parent=39 // pred_check
        %p1121 = pneg %p106
      $region42: #{cnn_forward.3} parent=39 // pred_check_branch
        %1123 = sbr.rel (%p1121) target = $region44
      $region43: #{cnn_forward.3} parent=39 // pred_region
        %s1124 = smul.u32 32, %s15
        %p1125 = scmp.lt.s32.totalorder %s1124, 63
        %s1126 = scalar_select %p1125, %s1124, 63
        %s1127 = smul.addr %s1126, 8
        %s1128 = scalar_lea.vmem %s3, %s1127
      $region44: #{cnn_forward.3} parent=39 // pred_fallthru
        _
    $region40: #{cnn_forward.3} parent=5 // pred_fallthru
      _
  $region6: #{cnn_forward.3} parent=0 // loop_footer
    %s13 = sadd.s32 1, %s9
  $region7: #{cnn_forward.3} parent=0 // loop_footer_branch
    %8 = sbr.rel target = $region3
  $region8: #{cnn_forward.3} parent=0 // loop_exit
    _

// kernel: cnn_forward.4
$region0: #{cnn_forward.4}
  #allocation0 [shape = 'u32[]', space=smem, size = 0x4, offset = 0x4, fixed_abs, tag = 'smem constant byte address 0x4 - core index']
  #allocation1 [shape = 'u32[144,128]{1,0:T(1,128)}', space=vmem, size = 0x12000, scoped, tag = 'internal scratch']
  %s0 = inlined_call_operand.vmem [shape: f32[56,2048], index: 0, kind: input, shape index: {}]
  %s1 = inlined_call_operand.vmem [shape: f32[2048,64], index: 1, kind: input, shape index: {}]
  %s2 = inlined_call_operand.vmem [shape: f32[1,16], index: 2, kind: input, shape index: {}]
  %s3 = inlined_call_operand.vmem [shape: f32[56,16], index: 3, kind: output, shape index: {}]
  %s4 = sld [smem:[#allocation0]]
  $region22: #{cnn_forward.4} parent=0
    _
  %s6 = ssub.s32 1, %s4
  %s7 = scalar_select 0, %s6, %s4
  // Predicated region
  $region2: #{cnn_forward.4} parent=0 // pred_check
    _
  $region3: #{cnn_forward.4} parent=0 // pred_check_branch
    %9 = sbr.rel (0) target = $region5
  $region4: #{cnn_forward.4} parent=0 // pred_region
    _
  $region5: #{cnn_forward.4} parent=0 // pred_fallthru
    _
  // Predicated region
  $region6: #{cnn_forward.4} parent=0 // pred_check
    _
  $region7: #{cnn_forward.4} parent=0 // pred_check_branch
    %11 = sbr.rel (0) target = $region9
  $region8: #{cnn_forward.4} parent=0 // pred_region
    _
  $region9: #{cnn_forward.4} parent=0 // pred_fallthru
    _
  // Predicated region
  $region10: #{cnn_forward.4} parent=0 // pred_check
    _
  $region11: #{cnn_forward.4} parent=0 // pred_check_branch
    %13 = sbr.rel (0) target = $region13
  $region12: #{cnn_forward.4} parent=0 // pred_region
    _
  $region13: #{cnn_forward.4} parent=0 // pred_fallthru
    _
  %v14 = vld [vmem:[%s0] sm:$0xff]
  %v15 = vld [vmem:[%s0 + $0x8] sm:$0xff]
  %v16 = vld [vmem:[%s0 + $0x10] sm:$0xff]
  %v17 = vld [vmem:[%s0 + $0x18] sm:$0xff]
  %v18 = vld [vmem:[%s0 + $0x20] sm:$0xff]
  %v19 = vld [vmem:[%s0 + $0x28] sm:$0xff]
  %v20 = vld [vmem:[%s0 + $0x30] sm:$0xff]
  %v21 = vld [vmem:[%s0 + $0x38] sm:$0xff]
  %v22 = vld [vmem:[%s0 + $0x40] sm:$0xff]
  %v23 = vld [vmem:[%s0 + $0x48] sm:$0xff]
  %v24 = vld [vmem:[%s0 + $0x50] sm:$0xff]
  %v25 = vld [vmem:[%s0 + $0x58] sm:$0xff]
  %v26 = vld [vmem:[%s0 + $0x60] sm:$0xff]
  %v27 = vld [vmem:[%s0 + $0x68] sm:$0xff]
  %v28 = vld [vmem:[%s0 + $0x70] sm:$0xff]
  %v29 = vld [vmem:[%s0 + $0x78] sm:$0xff]
  %v30 = vld [vmem:[%s0 + $0x80] sm:$0xff]
  %v31 = vld [vmem:[%s0 + $0x88] sm:$0xff]
  %v32 = vld [vmem:[%s0 + $0x90] sm:$0xff]
  %v33 = vld [vmem:[%s0 + $0x98] sm:$0xff]
  %v34 = vld [vmem:[%s0 + $0xa0] sm:$0xff]
  %v35 = vld [vmem:[%s0 + $0xa8] sm:$0xff]
  %v36 = vld [vmem:[%s0 + $0xb0] sm:$0xff]
  %v37 = vld [vmem:[%s0 + $0xb8] sm:$0xff]
  %v38 = vld [vmem:[%s0 + $0xc0] sm:$0xff]
  %v39 = vld [vmem:[%s0 + $0xc8] sm:$0xff]
  %v40 = vld [vmem:[%s0 + $0xd0] sm:$0xff]
  %v41 = vld [vmem:[%s0 + $0xd8] sm:$0xff]
  %v42 = vld [vmem:[%s0 + $0xe0] sm:$0xff]
  %v43 = vld [vmem:[%s0 + $0xe8] sm:$0xff]
  %v44 = vld [vmem:[%s0 + $0xf0] sm:$0xff]
  %v45 = vld [vmem:[%s0 + $0xf8] sm:$0xff]
  %v46 = vld [vmem:[%s0 + $0x100] sm:$0xff]
  %v47 = vld [vmem:[%s0 + $0x108] sm:$0xff]
  %v48 = vld [vmem:[%s0 + $0x110] sm:$0xff]
  %v49 = vld [vmem:[%s0 + $0x118] sm:$0xff]
  %v50 = vld [vmem:[%s0 + $0x120] sm:$0xff]
  %v51 = vld [vmem:[%s0 + $0x128] sm:$0xff]
  %v52 = vld [vmem:[%s0 + $0x130] sm:$0xff]
  %v53 = vld [vmem:[%s0 + $0x138] sm:$0xff]
  %v54 = vld [vmem:[%s0 + $0x140] sm:$0xff]
  %v55 = vld [vmem:[%s0 + $0x148] sm:$0xff]
  %v56 = vld [vmem:[%s0 + $0x150] sm:$0xff]
  %v57 = vld [vmem:[%s0 + $0x158] sm:$0xff]
  %v58 = vld [vmem:[%s0 + $0x160] sm:$0xff]
  %v59 = vld [vmem:[%s0 + $0x168] sm:$0xff]
  %v60 = vld [vmem:[%s0 + $0x170] sm:$0xff]
  %v61 = vld [vmem:[%s0 + $0x178] sm:$0xff]
  %v62 = vld [vmem:[%s0 + $0x180] sm:$0xff]
  %v63 = vld [vmem:[%s0 + $0x188] sm:$0xff]
  %v64 = vld [vmem:[%s0 + $0x190] sm:$0xff]
  %v65 = vld [vmem:[%s0 + $0x198] sm:$0xff]
  %v66 = vld [vmem:[%s0 + $0x1a0] sm:$0xff]
  %v67 = vld [vmem:[%s0 + $0x1a8] sm:$0xff]
  %v68 = vld [vmem:[%s0 + $0x1b0] sm:$0xff]
  %v69 = vld [vmem:[%s0 + $0x1b8] sm:$0xff]
  %v70 = vld [vmem:[%s0 + $0x1c0] sm:$0xff]
  %v71 = vld [vmem:[%s0 + $0x1c8] sm:$0xff]
  %v72 = vld [vmem:[%s0 + $0x1d0] sm:$0xff]
  %v73 = vld [vmem:[%s0 + $0x1d8] sm:$0xff]
  %v74 = vld [vmem:[%s0 + $0x1e0] sm:$0xff]
  %v75 = vld [vmem:[%s0 + $0x1e8] sm:$0xff]
  %v76 = vld [vmem:[%s0 + $0x1f0] sm:$0xff]
  %v77 = vld [vmem:[%s0 + $0x1f8] sm:$0xff]
  %v78 = vld [vmem:[%s0 + $0x200] sm:$0xff]
  %v79 = vld [vmem:[%s0 + $0x208] sm:$0xff]
  %v80 = vld [vmem:[%s0 + $0x210] sm:$0xff]
  %v81 = vld [vmem:[%s0 + $0x218] sm:$0xff]
  %v82 = vld [vmem:[%s0 + $0x220] sm:$0xff]
  %v83 = vld [vmem:[%s0 + $0x228] sm:$0xff]
  %v84 = vld [vmem:[%s0 + $0x230] sm:$0xff]
  %v85 = vld [vmem:[%s0 + $0x238] sm:$0xff]
  %v86 = vld [vmem:[%s0 + $0x240] sm:$0xff]
  %v87 = vld [vmem:[%s0 + $0x248] sm:$0xff]
  %v88 = vld [vmem:[%s0 + $0x250] sm:$0xff]
  %v89 = vld [vmem:[%s0 + $0x258] sm:$0xff]
  %v90 = vld [vmem:[%s0 + $0x260] sm:$0xff]
  %v91 = vld [vmem:[%s0 + $0x268] sm:$0xff]
  %v92 = vld [vmem:[%s0 + $0x270] sm:$0xff]
  %v93 = vld [vmem:[%s0 + $0x278] sm:$0xff]
  %v94 = vld [vmem:[%s0 + $0x280] sm:$0xff]
  %v95 = vld [vmem:[%s0 + $0x288] sm:$0xff]
  %v96 = vld [vmem:[%s0 + $0x290] sm:$0xff]
  %v97 = vld [vmem:[%s0 + $0x298] sm:$0xff]
  %v98 = vld [vmem:[%s0 + $0x2a0] sm:$0xff]
  %v99 = vld [vmem:[%s0 + $0x2a8] sm:$0xff]
  %v100 = vld [vmem:[%s0 + $0x2b0] sm:$0xff]
  %v101 = vld [vmem:[%s0 + $0x2b8] sm:$0xff]
  %v102 = vld [vmem:[%s0 + $0x2c0] sm:$0xff]
  %v103 = vld [vmem:[%s0 + $0x2c8] sm:$0xff]
  %v104 = vld [vmem:[%s0 + $0x2d0] sm:$0xff]
  %v105 = vld [vmem:[%s0 + $0x2d8] sm:$0xff]
  %v106 = vld [vmem:[%s0 + $0x2e0] sm:$0xff]
  %v107 = vld [vmem:[%s0 + $0x2e8] sm:$0xff]
  %v108 = vld [vmem:[%s0 + $0x2f0] sm:$0xff]
  %v109 = vld [vmem:[%s0 + $0x2f8] sm:$0xff]
  %v110 = vld [vmem:[%s0 + $0x300] sm:$0xff]
  %v111 = vld [vmem:[%s0 + $0x308] sm:$0xff]
  %v112 = vld [vmem:[%s0 + $0x310] sm:$0xff]
  %v113 = vld [vmem:[%s0 + $0x318] sm:$0xff]
  %v114 = vld [vmem:[%s0 + $0x320] sm:$0xff]
  %v115 = vld [vmem:[%s0 + $0x328] sm:$0xff]
  %v116 = vld [vmem:[%s0 + $0x330] sm:$0xff]
  %v117 = vld [vmem:[%s0 + $0x338] sm:$0xff]
  %v118 = vld [vmem:[%s0 + $0x340] sm:$0xff]
  %v119 = vld [vmem:[%s0 + $0x348] sm:$0xff]
  %v120 = vld [vmem:[%s0 + $0x350] sm:$0xff]
  %v121 = vld [vmem:[%s0 + $0x358] sm:$0xff]
  %v122 = vld [vmem:[%s0 + $0x360] sm:$0xff]
  %v123 = vld [vmem:[%s0 + $0x368] sm:$0xff]
  %v124 = vld [vmem:[%s0 + $0x370] sm:$0xff]
  %v125 = vld [vmem:[%s0 + $0x378] sm:$0xff]
  %v126 = vld [vmem:[%s1] sm:$0xff]
  %v127 = vld [vmem:[%s1 + $0x8] sm:$0xff]
  %v128 = vld [vmem:[%s1 + $0x10] sm:$0xff]
  %v129 = vld [vmem:[%s1 + $0x18] sm:$0xff]
  %v130 = vld [vmem:[%s1 + $0x20] sm:$0xff]
  %v131 = vld [vmem:[%s1 + $0x28] sm:$0xff]
  %v132 = vld [vmem:[%s1 + $0x30] sm:$0xff]
  %v133 = vld [vmem:[%s1 + $0x38] sm:$0xff]
  %v134 = vld [vmem:[%s1 + $0x40] sm:$0xff]
  %v135 = vld [vmem:[%s1 + $0x48] sm:$0xff]
  %v136 = vld [vmem:[%s1 + $0x50] sm:$0xff]
  %v137 = vld [vmem:[%s1 + $0x58] sm:$0xff]
  %v138 = vld [vmem:[%s1 + $0x60] sm:$0xff]
  %v139 = vld [vmem:[%s1 + $0x68] sm:$0xff]
  %v140 = vld [vmem:[%s1 + $0x70] sm:$0xff]
  %v141 = vld [vmem:[%s1 + $0x78] sm:$0xff]
  %v142 = vld [vmem:[%s1 + $0x80] sm:$0xff]
  %v143 = vld [vmem:[%s1 + $0x88] sm:$0xff]
  %v144 = vld [vmem:[%s1 + $0x90] sm:$0xff]
  %v145 = vld [vmem:[%s1 + $0x98] sm:$0xff]
  %v146 = vld [vmem:[%s1 + $0xa0] sm:$0xff]
  %v147 = vld [vmem:[%s1 + $0xa8] sm:$0xff]
  %v148 = vld [vmem:[%s1 + $0xb0] sm:$0xff]
  %v149 = vld [vmem:[%s1 + $0xb8] sm:$0xff]
  %v150 = vld [vmem:[%s1 + $0xc0] sm:$0xff]
  %v151 = vld [vmem:[%s1 + $0xc8] sm:$0xff]
  %v152 = vld [vmem:[%s1 + $0xd0] sm:$0xff]
  %v153 = vld [vmem:[%s1 + $0xd8] sm:$0xff]
  %v154 = vld [vmem:[%s1 + $0xe0] sm:$0xff]
  %v155 = vld [vmem:[%s1 + $0xe8] sm:$0xff]
  %v156 = vld [vmem:[%s1 + $0xf0] sm:$0xff]
  %v157 = vld [vmem:[%s1 + $0xf8] sm:$0xff]
  %v158 = vld [vmem:[%s1 + $0x100] sm:$0xff]
  %v159 = vld [vmem:[%s1 + $0x108] sm:$0xff]
  %v160 = vld [vmem:[%s1 + $0x110] sm:$0xff]
  %v161 = vld [vmem:[%s1 + $0x118] sm:$0xff]
  %v162 = vld [vmem:[%s1 + $0x120] sm:$0xff]
  %v163 = vld [vmem:[%s1 + $0x128] sm:$0xff]
  %v164 = vld [vmem:[%s1 + $0x130] sm:$0xff]
  %v165 = vld [vmem:[%s1 + $0x138] sm:$0xff]
  %v166 = vld [vmem:[%s1 + $0x140] sm:$0xff]
  %v167 = vld [vmem:[%s1 + $0x148] sm:$0xff]
  %v168 = vld [vmem:[%s1 + $0x150] sm:$0xff]
  %v169 = vld [vmem:[%s1 + $0x158] sm:$0xff]
  %v170 = vld [vmem:[%s1 + $0x160] sm:$0xff]
  %v171 = vld [vmem:[%s1 + $0x168] sm:$0xff]
  %v172 = vld [vmem:[%s1 + $0x170] sm:$0xff]
  %v173 = vld [vmem:[%s1 + $0x178] sm:$0xff]
  %v174 = vld [vmem:[%s1 + $0x180] sm:$0xff]
  %v175 = vld [vmem:[%s1 + $0x188] sm:$0xff]
  %v176 = vld [vmem:[%s1 + $0x190] sm:$0xff]
  %v177 = vld [vmem:[%s1 + $0x198] sm:$0xff]
  %v178 = vld [vmem:[%s1 + $0x1a0] sm:$0xff]
  %v179 = vld [vmem:[%s1 + $0x1a8] sm:$0xff]
  %v180 = vld [vmem:[%s1 + $0x1b0] sm:$0xff]
  %v181 = vld [vmem:[%s1 + $0x1b8] sm:$0xff]
  %v182 = vld [vmem:[%s1 + $0x1c0] sm:$0xff]
  %v183 = vld [vmem:[%s1 + $0x1c8] sm:$0xff]
  %v184 = vld [vmem:[%s1 + $0x1d0] sm:$0xff]
  %v185 = vld [vmem:[%s1 + $0x1d8] sm:$0xff]
  %v186 = vld [vmem:[%s1 + $0x1e0] sm:$0xff]
  %v187 = vld [vmem:[%s1 + $0x1e8] sm:$0xff]
  %v188 = vld [vmem:[%s1 + $0x1f0] sm:$0xff]
  %v189 = vld [vmem:[%s1 + $0x1f8] sm:$0xff]
  %v190 = vld [vmem:[%s1 + $0x200] sm:$0xff]
  %v191 = vld [vmem:[%s1 + $0x208] sm:$0xff]
  %v192 = vld [vmem:[%s1 + $0x210] sm:$0xff]
  %v193 = vld [vmem:[%s1 + $0x218] sm:$0xff]
  %v194 = vld [vmem:[%s1 + $0x220] sm:$0xff]
  %v195 = vld [vmem:[%s1 + $0x228] sm:$0xff]
  %v196 = vld [vmem:[%s1 + $0x230] sm:$0xff]
  %v197 = vld [vmem:[%s1 + $0x238] sm:$0xff]
  %v198 = vld [vmem:[%s1 + $0x240] sm:$0xff]
  %v199 = vld [vmem:[%s1 + $0x248] sm:$0xff]
  %v200 = vld [vmem:[%s1 + $0x250] sm:$0xff]
  %v201 = vld [vmem:[%s1 + $0x258] sm:$0xff]
  %v202 = vld [vmem:[%s1 + $0x260] sm:$0xff]
  %v203 = vld [vmem:[%s1 + $0x268] sm:$0xff]
  %v204 = vld [vmem:[%s1 + $0x270] sm:$0xff]
  %v205 = vld [vmem:[%s1 + $0x278] sm:$0xff]
  %v206 = vld [vmem:[%s1 + $0x280] sm:$0xff]
  %v207 = vld [vmem:[%s1 + $0x288] sm:$0xff]
  %v208 = vld [vmem:[%s1 + $0x290] sm:$0xff]
  %v209 = vld [vmem:[%s1 + $0x298] sm:$0xff]
  %v210 = vld [vmem:[%s1 + $0x2a0] sm:$0xff]
  %v211 = vld [vmem:[%s1 + $0x2a8] sm:$0xff]
  %v212 = vld [vmem:[%s1 + $0x2b0] sm:$0xff]
  %v213 = vld [vmem:[%s1 + $0x2b8] sm:$0xff]
  %v214 = vld [vmem:[%s1 + $0x2c0] sm:$0xff]
  %v215 = vld [vmem:[%s1 + $0x2c8] sm:$0xff]
  %v216 = vld [vmem:[%s1 + $0x2d0] sm:$0xff]
  %v217 = vld [vmem:[%s1 + $0x2d8] sm:$0xff]
  %v218 = vld [vmem:[%s1 + $0x2e0] sm:$0xff]
  %v219 = vld [vmem:[%s1 + $0x2e8] sm:$0xff]
  %v220 = vld [vmem:[%s1 + $0x2f0] sm:$0xff]
  %v221 = vld [vmem:[%s1 + $0x2f8] sm:$0xff]
  %v222 = vld [vmem:[%s1 + $0x300] sm:$0xff]
  %v223 = vld [vmem:[%s1 + $0x308] sm:$0xff]
  %v224 = vld [vmem:[%s1 + $0x310] sm:$0xff]
  %v225 = vld [vmem:[%s1 + $0x318] sm:$0xff]
  %v226 = vld [vmem:[%s1 + $0x320] sm:$0xff]
  %v227 = vld [vmem:[%s1 + $0x328] sm:$0xff]
  %v228 = vld [vmem:[%s1 + $0x330] sm:$0xff]
  %v229 = vld [vmem:[%s1 + $0x338] sm:$0xff]
  %v230 = vld [vmem:[%s1 + $0x340] sm:$0xff]
  %v231 = vld [vmem:[%s1 + $0x348] sm:$0xff]
  %v232 = vld [vmem:[%s1 + $0x350] sm:$0xff]
  %v233 = vld [vmem:[%s1 + $0x358] sm:$0xff]
  %v234 = vld [vmem:[%s1 + $0x360] sm:$0xff]
  %v235 = vld [vmem:[%s1 + $0x368] sm:$0xff]
  %v236 = vld [vmem:[%s1 + $0x370] sm:$0xff]
  %v237 = vld [vmem:[%s1 + $0x378] sm:$0xff]
  %v238 = vld [vmem:[%s1 + $0x380] sm:$0xff]
  %v239 = vld [vmem:[%s1 + $0x388] sm:$0xff]
  %v240 = vld [vmem:[%s1 + $0x390] sm:$0xff]
  %v241 = vld [vmem:[%s1 + $0x398] sm:$0xff]
  %v242 = vld [vmem:[%s1 + $0x3a0] sm:$0xff]
  %v243 = vld [vmem:[%s1 + $0x3a8] sm:$0xff]
  %v244 = vld [vmem:[%s1 + $0x3b0] sm:$0xff]
  %v245 = vld [vmem:[%s1 + $0x3b8] sm:$0xff]
  %v246 = vld [vmem:[%s1 + $0x3c0] sm:$0xff]
  %v247 = vld [vmem:[%s1 + $0x3c8] sm:$0xff]
  %v248 = vld [vmem:[%s1 + $0x3d0] sm:$0xff]
  %v249 = vld [vmem:[%s1 + $0x3d8] sm:$0xff]
  %v250 = vld [vmem:[%s1 + $0x3e0] sm:$0xff]
  %v251 = vld [vmem:[%s1 + $0x3e8] sm:$0xff]
  %v252 = vld [vmem:[%s1 + $0x3f0] sm:$0xff]
  %v253 = vld [vmem:[%s1 + $0x3f8] sm:$0xff]
  %v254 = vld [vmem:[%s1 + $0x400] sm:$0xff]
  %v255 = vld [vmem:[%s1 + $0x408] sm:$0xff]
  %v256 = vld [vmem:[%s1 + $0x410] sm:$0xff]
  %v257 = vld [vmem:[%s1 + $0x418] sm:$0xff]
  %v258 = vld [vmem:[%s1 + $0x420] sm:$0xff]
  %v259 = vld [vmem:[%s1 + $0x428] sm:$0xff]
  %v260 = vld [vmem:[%s1 + $0x430] sm:$0xff]
  %v261 = vld [vmem:[%s1 + $0x438] sm:$0xff]
  %v262 = vld [vmem:[%s1 + $0x440] sm:$0xff]
  %v263 = vld [vmem:[%s1 + $0x448] sm:$0xff]
  %v264 = vld [vmem:[%s1 + $0x450] sm:$0xff]
  %v265 = vld [vmem:[%s1 + $0x458] sm:$0xff]
  %v266 = vld [vmem:[%s1 + $0x460] sm:$0xff]
  %v267 = vld [vmem:[%s1 + $0x468] sm:$0xff]
  %v268 = vld [vmem:[%s1 + $0x470] sm:$0xff]
  %v269 = vld [vmem:[%s1 + $0x478] sm:$0xff]
  %v270 = vld [vmem:[%s1 + $0x480] sm:$0xff]
  %v271 = vld [vmem:[%s1 + $0x488] sm:$0xff]
  %v272 = vld [vmem:[%s1 + $0x490] sm:$0xff]
  %v273 = vld [vmem:[%s1 + $0x498] sm:$0xff]
  %v274 = vld [vmem:[%s1 + $0x4a0] sm:$0xff]
  %v275 = vld [vmem:[%s1 + $0x4a8] sm:$0xff]
  %v276 = vld [vmem:[%s1 + $0x4b0] sm:$0xff]
  %v277 = vld [vmem:[%s1 + $0x4b8] sm:$0xff]
  %v278 = vld [vmem:[%s1 + $0x4c0] sm:$0xff]
  %v279 = vld [vmem:[%s1 + $0x4c8] sm:$0xff]
  %v280 = vld [vmem:[%s1 + $0x4d0] sm:$0xff]
  %v281 = vld [vmem:[%s1 + $0x4d8] sm:$0xff]
  %v282 = vld [vmem:[%s1 + $0x4e0] sm:$0xff]
  %v283 = vld [vmem:[%s1 + $0x4e8] sm:$0xff]
  %v284 = vld [vmem:[%s1 + $0x4f0] sm:$0xff]
  %v285 = vld [vmem:[%s1 + $0x4f8] sm:$0xff]
  %v286 = vld [vmem:[%s1 + $0x500] sm:$0xff]
  %v287 = vld [vmem:[%s1 + $0x508] sm:$0xff]
  %v288 = vld [vmem:[%s1 + $0x510] sm:$0xff]
  %v289 = vld [vmem:[%s1 + $0x518] sm:$0xff]
  %v290 = vld [vmem:[%s1 + $0x520] sm:$0xff]
  %v291 = vld [vmem:[%s1 + $0x528] sm:$0xff]
  %v292 = vld [vmem:[%s1 + $0x530] sm:$0xff]
  %v293 = vld [vmem:[%s1 + $0x538] sm:$0xff]
  %v294 = vld [vmem:[%s1 + $0x540] sm:$0xff]
  %v295 = vld [vmem:[%s1 + $0x548] sm:$0xff]
  %v296 = vld [vmem:[%s1 + $0x550] sm:$0xff]
  %v297 = vld [vmem:[%s1 + $0x558] sm:$0xff]
  %v298 = vld [vmem:[%s1 + $0x560] sm:$0xff]
  %v299 = vld [vmem:[%s1 + $0x568] sm:$0xff]
  %v300 = vld [vmem:[%s1 + $0x570] sm:$0xff]
  %v301 = vld [vmem:[%s1 + $0x578] sm:$0xff]
  %v302 = vld [vmem:[%s1 + $0x580] sm:$0xff]
  %v303 = vld [vmem:[%s1 + $0x588] sm:$0xff]
  %v304 = vld [vmem:[%s1 + $0x590] sm:$0xff]
  %v305 = vld [vmem:[%s1 + $0x598] sm:$0xff]
  %v306 = vld [vmem:[%s1 + $0x5a0] sm:$0xff]
  %v307 = vld [vmem:[%s1 + $0x5a8] sm:$0xff]
  %v308 = vld [vmem:[%s1 + $0x5b0] sm:$0xff]
  %v309 = vld [vmem:[%s1 + $0x5b8] sm:$0xff]
  %v310 = vld [vmem:[%s1 + $0x5c0] sm:$0xff]
  %v311 = vld [vmem:[%s1 + $0x5c8] sm:$0xff]
  %v312 = vld [vmem:[%s1 + $0x5d0] sm:$0xff]
  %v313 = vld [vmem:[%s1 + $0x5d8] sm:$0xff]
  %v314 = vld [vmem:[%s1 + $0x5e0] sm:$0xff]
  %v315 = vld [vmem:[%s1 + $0x5e8] sm:$0xff]
  %v316 = vld [vmem:[%s1 + $0x5f0] sm:$0xff]
  %v317 = vld [vmem:[%s1 + $0x5f8] sm:$0xff]
  %v318 = vld [vmem:[%s1 + $0x600] sm:$0xff]
  %v319 = vld [vmem:[%s1 + $0x608] sm:$0xff]
  %v320 = vld [vmem:[%s1 + $0x610] sm:$0xff]
  %v321 = vld [vmem:[%s1 + $0x618] sm:$0xff]
  %v322 = vld [vmem:[%s1 + $0x620] sm:$0xff]
  %v323 = vld [vmem:[%s1 + $0x628] sm:$0xff]
  %v324 = vld [vmem:[%s1 + $0x630] sm:$0xff]
  %v325 = vld [vmem:[%s1 + $0x638] sm:$0xff]
  %v326 = vld [vmem:[%s1 + $0x640] sm:$0xff]
  %v327 = vld [vmem:[%s1 + $0x648] sm:$0xff]
  %v328 = vld [vmem:[%s1 + $0x650] sm:$0xff]
  %v329 = vld [vmem:[%s1 + $0x658] sm:$0xff]
  %v330 = vld [vmem:[%s1 + $0x660] sm:$0xff]
  %v331 = vld [vmem:[%s1 + $0x668] sm:$0xff]
  %v332 = vld [vmem:[%s1 + $0x670] sm:$0xff]
  %v333 = vld [vmem:[%s1 + $0x678] sm:$0xff]
  %v334 = vld [vmem:[%s1 + $0x680] sm:$0xff]
  %v335 = vld [vmem:[%s1 + $0x688] sm:$0xff]
  %v336 = vld [vmem:[%s1 + $0x690] sm:$0xff]
  %v337 = vld [vmem:[%s1 + $0x698] sm:$0xff]
  %v338 = vld [vmem:[%s1 + $0x6a0] sm:$0xff]
  %v339 = vld [vmem:[%s1 + $0x6a8] sm:$0xff]
  %v340 = vld [vmem:[%s1 + $0x6b0] sm:$0xff]
  %v341 = vld [vmem:[%s1 + $0x6b8] sm:$0xff]
  %v342 = vld [vmem:[%s1 + $0x6c0] sm:$0xff]
  %v343 = vld [vmem:[%s1 + $0x6c8] sm:$0xff]
  %v344 = vld [vmem:[%s1 + $0x6d0] sm:$0xff]
  %v345 = vld [vmem:[%s1 + $0x6d8] sm:$0xff]
  %v346 = vld [vmem:[%s1 + $0x6e0] sm:$0xff]
  %v347 = vld [vmem:[%s1 + $0x6e8] sm:$0xff]
  %v348 = vld [vmem:[%s1 + $0x6f0] sm:$0xff]
  %v349 = vld [vmem:[%s1 + $0x6f8] sm:$0xff]
  %v350 = vld [vmem:[%s1 + $0x700] sm:$0xff]
  %v351 = vld [vmem:[%s1 + $0x708] sm:$0xff]
  %v352 = vld [vmem:[%s1 + $0x710] sm:$0xff]
  %v353 = vld [vmem:[%s1 + $0x718] sm:$0xff]
  %v354 = vld [vmem:[%s1 + $0x720] sm:$0xff]
  %v355 = vld [vmem:[%s1 + $0x728] sm:$0xff]
  %v356 = vld [vmem:[%s1 + $0x730] sm:$0xff]
  %v357 = vld [vmem:[%s1 + $0x738] sm:$0xff]
  %v358 = vld [vmem:[%s1 + $0x740] sm:$0xff]
  %v359 = vld [vmem:[%s1 + $0x748] sm:$0xff]
  %v360 = vld [vmem:[%s1 + $0x750] sm:$0xff]
  %v361 = vld [vmem:[%s1 + $0x758] sm:$0xff]
  %v362 = vld [vmem:[%s1 + $0x760] sm:$0xff]
  %v363 = vld [vmem:[%s1 + $0x768] sm:$0xff]
  %v364 = vld [vmem:[%s1 + $0x770] sm:$0xff]
  %v365 = vld [vmem:[%s1 + $0x778] sm:$0xff]
  %v366 = vld [vmem:[%s1 + $0x780] sm:$0xff]
  %v367 = vld [vmem:[%s1 + $0x788] sm:$0xff]
  %v368 = vld [vmem:[%s1 + $0x790] sm:$0xff]
  %v369 = vld [vmem:[%s1 + $0x798] sm:$0xff]
  %v370 = vld [vmem:[%s1 + $0x7a0] sm:$0xff]
  %v371 = vld [vmem:[%s1 + $0x7a8] sm:$0xff]
  %v372 = vld [vmem:[%s1 + $0x7b0] sm:$0xff]
  %v373 = vld [vmem:[%s1 + $0x7b8] sm:$0xff]
  %v374 = vld [vmem:[%s1 + $0x7c0] sm:$0xff]
  %v375 = vld [vmem:[%s1 + $0x7c8] sm:$0xff]
  %v376 = vld [vmem:[%s1 + $0x7d0] sm:$0xff]
  %v377 = vld [vmem:[%s1 + $0x7d8] sm:$0xff]
  %v378 = vld [vmem:[%s1 + $0x7e0] sm:$0xff]
  %v379 = vld [vmem:[%s1 + $0x7e8] sm:$0xff]
  %v380 = vld [vmem:[%s1 + $0x7f0] sm:$0xff]
  %v381 = vld [vmem:[%s1 + $0x7f8] sm:$0xff]
  %382 = vmatprep.subr.mxu0 0.0
  %383 = vmatpush1.msra.mxu0 %v126
  %384 = vmatprep.subr.mxu0 0.0
  %385 = vmatpush1.msra.mxu0 %v127
  %386 = vmatprep.subr.mxu0 0.0
  %387 = vmatpush1.msra.mxu0 %v128
  %388 = vmatprep.subr.mxu0 0.0
  %389 = vmatpush1.msra.mxu0 %v129
  %390 = vmatprep.subr.mxu0 0.0
  %391 = vmatpush1.msra.mxu0 %v130
  %392 = vmatprep.subr.mxu0 0.0
  %393 = vmatpush1.msra.mxu0 %v131
  %394 = vmatprep.subr.mxu0 0.0
  %395 = vmatpush1.msra.mxu0 %v132
  %396 = vmatprep.subr.mxu0 0.0
  %397 = vmatpush1.msra.mxu0 %v133
  %398 = vmatprep.subr.mxu0 0.0
  %399 = vmatpush1.msra.mxu0 %v134
  %400 = vmatprep.subr.mxu0 0.0
  %401 = vmatpush1.msra.mxu0 %v135
  %402 = vmatprep.subr.mxu0 0.0
  %403 = vmatpush1.msra.mxu0 %v136
  %404 = vmatprep.subr.mxu0 0.0
  %405 = vmatpush1.msra.mxu0 %v137
  %406 = vmatprep.subr.mxu0 0.0
  %407 = vmatpush1.msra.mxu0 %v138
  %408 = vmatprep.subr.mxu0 0.0
  %409 = vmatpush1.msra.mxu0 %v139
  %410 = vmatprep.subr.mxu0 0.0
  %411 = vmatpush1.msra.mxu0 %v140
  %412 = vmatprep.subr.mxu0 0.0
  %413 = vmatpush1.msra.mxu0 %v141
  %414 = vmatprep.subr.mxu0 0.0
  %415 = vmatpush1.msra.mxu0 %v142
  %416 = vmatprep.subr.mxu0 0.0
  %417 = vmatpush1.msra.mxu0 %v143
  %418 = vmatprep.subr.mxu0 0.0
  %419 = vmatpush1.msra.mxu0 %v144
  %420 = vmatprep.subr.mxu0 0.0
  %421 = vmatpush1.msra.mxu0 %v145
  %422 = vmatprep.subr.mxu0 0.0
  %423 = vmatpush1.msra.mxu0 %v146
  %424 = vmatprep.subr.mxu0 0.0
  %425 = vmatpush1.msra.mxu0 %v147
  %426 = vmatprep.subr.mxu0 0.0
  %427 = vmatpush1.msra.mxu0 %v148
  %428 = vmatprep.subr.mxu0 0.0
  %429 = vmatpush1.msra.mxu0 %v149
  %430 = vmatprep.subr.mxu0 0.0
  %431 = vmatpush1.msra.mxu0 %v150
  %432 = vmatprep.subr.mxu0 0.0
  %433 = vmatpush1.msra.mxu0 %v151
  %434 = vmatprep.subr.mxu0 0.0
  %435 = vmatpush1.msra.mxu0 %v152
  %436 = vmatprep.subr.mxu0 0.0
  %437 = vmatpush1.msra.mxu0 %v153
  %438 = vmatprep.subr.mxu0 0.0
  %439 = vmatpush1.msra.mxu0 %v154
  %440 = vmatprep.subr.mxu0 0.0
  %441 = vmatpush1.msra.mxu0 %v155
  %442 = vmatprep.subr.mxu0 0.0
  %443 = vmatpush1.msra.mxu0 %v156
  %444 = vmatprep.subr.mxu0 0.0
  %445 = vmatpush1.msra.mxu0 %v157
  %446 = vmatprep.mubr.f32.mxu0 %v15
  %447 = vmatmul.mubr.f32.gmra.mrb[0].mxu0 %v14
  %v448 = vpop.f32.mrb[0].mxu0
  %v449 = vadd.f32 0.0, %v448
  %v450 = vpop.f32.mrb[0].mxu0
  %451 = vmatprep.mubr.f32.mxu0 %v31
  %452 = vmatmul.mubr.f32.gmra.mrb[0].mxu0 %v30
  %v453 = vpop.f32.mrb[0].mxu0
  %v454 = vadd.f32 0.0, %v453
  %v455 = vpop.f32.mrb[0].mxu0
  %456 = vmatprep.mubr.f32.mxu0 %v47
  %457 = vmatmul.mubr.f32.gmra.mrb[0].mxu0 %v46
  %v458 = vpop.f32.mrb[0].mxu0
  %v459 = vadd.f32 0.0, %v458
  %v460 = vpop.f32.mrb[0].mxu0
  %461 = vmatprep.mubr.f32.mxu0 %v63
  %462 = vmatmul.mubr.f32.gmra.mrb[0].mxu0 %v62
  %v463 = vpop.f32.mrb[0].mxu0
  %v464 = vadd.f32 0.0, %v463
  %v465 = vpop.f32.mrb[0].mxu0
  %466 = vmatprep.mubr.f32.mxu0 %v79
  %467 = vmatmul.mubr.f32.gmra.mrb[0].mxu0 %v78
  %v468 = vpop.f32.mrb[0].mxu0
  %v469 = vadd.f32 0.0, %v468
  %v470 = vpop.f32.mrb[0].mxu0
  %471 = vmatprep.mubr.f32.mxu0 %v95
  %472 = vmatmul.mubr.f32.gmra.mrb[0].mxu0 %v94
  %v473 = vpop.f32.mrb[0].mxu0
  %v474 = vadd.f32 0.0, %v473
  %v475 = vpop.f32.mrb[0].mxu0
  %476 = vmatprep.mubr.f32.mxu0 %v111
  %477 = vmatmul.mubr.f32.gmra.mrb[0].mxu0 %v110
  %v478 = vpop.f32.mrb[0].mxu0
  %v479 = vadd.f32 0.0, %v478
  %v480 = vpop.f32.mrb[0].mxu0
  %481 = vdwg.mxu0
  %482 = vmatprep.subr.mxu0 0.0
  %483 = vmatpush1.msra.mxu0 %v158
  %484 = vmatprep.subr.mxu0 0.0
  %485 = vmatpush1.msra.mxu0 %v159
  %486 = vmatprep.subr.mxu0 0.0
  %487 = vmatpush1.msra.mxu0 %v160
  %488 = vmatprep.subr.mxu0 0.0
  %489 = vmatpush1.msra.mxu0 %v161
  %490 = vmatprep.subr.mxu0 0.0
  %491 = vmatpush1.msra.mxu0 %v162
  %492 = vmatprep.subr.mxu0 0.0
  %493 = vmatpush1.msra.mxu0 %v163
  %494 = vmatprep.subr.mxu0 0.0
  %495 = vmatpush1.msra.mxu0 %v164
  %496 = vmatprep.subr.mxu0 0.0
  %497 = vmatpush1.msra.mxu0 %v165
  %498 = vmatprep.subr.mxu0 0.0
  %499 = vmatpush1.msra.mxu0 %v166
  %500 = vmatprep.subr.mxu0 0.0
  %501 = vmatpush1.msra.mxu0 %v167
  %502 = vmatprep.subr.mxu0 0.0
  %503 = vmatpush1.msra.mxu0 %v168
  %504 = vmatprep.subr.mxu0 0.0
  %505 = vmatpush1.msra.mxu0 %v169
  %506 = vmatprep.subr.mxu0 0.0
  %507 = vmatpush1.msra.mxu0 %v170
  %508 = vmatprep.subr.mxu0 0.0
  %509 = vmatpush1.msra.mxu0 %v171
  %510 = vmatprep.subr.mxu0 0.0
  %511 = vmatpush1.msra.mxu0 %v172
  %512 = vmatprep.subr.mxu0 0.0
  %513 = vmatpush1.msra.mxu0 %v173
  %514 = vmatprep.subr.mxu0 0.0
  %515 = vmatpush1.msra.mxu0 %v174
  %516 = vmatprep.subr.mxu0 0.0
  %517 = vmatpush1.msra.mxu0 %v175
  %518 = vmatprep.subr.mxu0 0.0
  %519 = vmatpush1.msra.mxu0 %v176
  %520 = vmatprep.subr.mxu0 0.0
  %521 = vmatpush1.msra.mxu0 %v177
  %522 = vmatprep.subr.mxu0 0.0
  %523 = vmatpush1.msra.mxu0 %v178
  %524 = vmatprep.subr.mxu0 0.0
  %525 = vmatpush1.msra.mxu0 %v179
  %526 = vmatprep.subr.mxu0 0.0
  %527 = vmatpush1.msra.mxu0 %v180
  %528 = vmatprep.subr.mxu0 0.0
  %529 = vmatpush1.msra.mxu0 %v181
  %530 = vmatprep.subr.mxu0 0.0
  %531 = vmatpush1.msra.mxu0 %v182
  %532 = vmatprep.subr.mxu0 0.0
  %533 = vmatpush1.msra.mxu0 %v183
  %534 = vmatprep.subr.mxu0 0.0
  %535 = vmatpush1.msra.mxu0 %v184
  %536 = vmatprep.subr.mxu0 0.0
  %537 = vmatpush1.msra.mxu0 %v185
  %538 = vmatprep.subr.mxu0 0.0
  %539 = vmatpush1.msra.mxu0 %v186
  %540 = vmatprep.subr.mxu0 0.0
  %541 = vmatpush1.msra.mxu0 %v187
  %542 = vmatprep.subr.mxu0 0.0
  %543 = vmatpush1.msra.mxu0 %v188
  %544 = vmatprep.subr.mxu0 0.0
  %545 = vmatpush1.msra.mxu0 %v189
  %546 = vmatprep.mubr.f32.mxu0 %v17
  %547 = vmatmul.mubr.f32.gmra.mrb[0].mxu0 %v16
  %v548 = vpop.f32.mrb[0].mxu0
  %v549 = vadd.f32 %v449, %v548
  %v550 = vpop.f32.mrb[0].mxu0
  %551 = vmatprep.mubr.f32.mxu0 %v33
  %552 = vmatmul.mubr.f32.gmra.mrb[0].mxu0 %v32
  %v553 = vpop.f32.mrb[0].mxu0
  %v554 = vadd.f32 %v454, %v553
  %v555 = vpop.f32.mrb[0].mxu0
  %556 = vmatprep.mubr.f32.mxu0 %v49
  %557 = vmatmul.mubr.f32.gmra.mrb[0].mxu0 %v48
  %v558 = vpop.f32.mrb[0].mxu0
  %v559 = vadd.f32 %v459, %v558
  %v560 = vpop.f32.mrb[0].mxu0
  %561 = vmatprep.mubr.f32.mxu0 %v65
  %562 = vmatmul.mubr.f32.gmra.mrb[0].mxu0 %v64
  %v563 = vpop.f32.mrb[0].mxu0
  %v564 = vadd.f32 %v464, %v563
  %v565 = vpop.f32.mrb[0].mxu0
  %566 = vmatprep.mubr.f32.mxu0 %v81
  %567 = vmatmul.mubr.f32.gmra.mrb[0].mxu0 %v80
  %v568 = vpop.f32.mrb[0].mxu0
  %v569 = vadd.f32 %v469, %v568
  %v570 = vpop.f32.mrb[0].mxu0
  %571 = vmatprep.mubr.f32.mxu0 %v97
  %572 = vmatmul.mubr.f32.gmra.mrb[0].mxu0 %v96
  %v573 = vpop.f32.mrb[0].mxu0
  %v574 = vadd.f32 %v474, %v573
  %v575 = vpop.f32.mrb[0].mxu0
  %576 = vmatprep.mubr.f32.mxu0 %v113
  %577 = vmatmul.mubr.f32.gmra.mrb[0].mxu0 %v112
  %v578 = vpop.f32.mrb[0].mxu0
  %v579 = vadd.f32 %v479, %v578
  %v580 = vpop.f32.mrb[0].mxu0
  %581 = vdwg.mxu0
  %582 = vmatprep.subr.mxu0 0.0
  %583 = vmatpush1.msra.mxu0 %v190
  %584 = vmatprep.subr.mxu0 0.0
  %585 = vmatpush1.msra.mxu0 %v191
  %586 = vmatprep.subr.mxu0 0.0
  %587 = vmatpush1.msra.mxu0 %v192
  %588 = vmatprep.subr.mxu0 0.0
  %589 = vmatpush1.msra.mxu0 %v193
  %590 = vmatprep.subr.mxu0 0.0
  %591 = vmatpush1.msra.mxu0 %v194
  %592 = vmatprep.subr.mxu0 0.0
  %593 = vmatpush1.msra.mxu0 %v195
  %594 = vmatprep.subr.mxu0 0.0
  %595 = vmatpush1.msra.mxu0 %v196
  %596 = vmatprep.subr.mxu0 0.0
  %597 = vmatpush1.msra.mxu0 %v197
  %598 = vmatprep.subr.mxu0 0.0
  %599 = vmatpush1.msra.mxu0 %v198
  %600 = vmatprep.subr.mxu0 0.0
  %601 = vmatpush1.msra.mxu0 %v199
  %602 = vmatprep.subr.mxu0 0.0
  %603 = vmatpush1.msra.mxu0 %v200
  %604 = vmatprep.subr.mxu0 0.0
  %605 = vmatpush1.msra.mxu0 %v201
  %606 = vmatprep.subr.mxu0 0.0
  %607 = vmatpush1.msra.mxu0 %v202
  %608 = vmatprep.subr.mxu0 0.0
  %609 = vmatpush1.msra.mxu0 %v203
  %610 = vmatprep.subr.mxu0 0.0
  %611 = vmatpush1.msra.mxu0 %v204
  %612 = vmatprep.subr.mxu0 0.0
  %613 = vmatpush1.msra.mxu0 %v205
  %614 = vmatprep.subr.mxu0 0.0
  %615 = vmatpush1.msra.mxu0 %v206
  %616 = vmatprep.subr.mxu0 0.0
  %617 = vmatpush1.msra.mxu0 %v207
  %618 = vmatprep.subr.mxu0 0.0
  %619 = vmatpush1.msra.mxu0 %v208
  %620 = vmatprep.subr.mxu0 0.0
  %621 = vmatpush1.msra.mxu0 %v209
  %622 = vmatprep.subr.mxu0 0.0
  %623 = vmatpush1.msra.mxu0 %v210
  %624 = vmatprep.subr.mxu0 0.0
  %625 = vmatpush1.msra.mxu0 %v211
  %626 = vmatprep.subr.mxu0 0.0
  %627 = vmatpush1.msra.mxu0 %v212
  %628 = vmatprep.subr.mxu0 0.0
  %629 = vmatpush1.msra.mxu0 %v213
  %630 = vmatprep.subr.mxu0 0.0
  %631 = vmatpush1.msra.mxu0 %v214
  %632 = vmatprep.subr.mxu0 0.0
  %633 = vmatpush1.msra.mxu0 %v215
  %634 = vmatprep.subr.mxu0 0.0
  %635 = vmatpush1.msra.mxu0 %v216
  %636 = vmatprep.subr.mxu0 0.0
  %637 = vmatpush1.msra.mxu0 %v217
  %638 = vmatprep.subr.mxu0 0.0
  %639 = vmatpush1.msra.mxu0 %v218
  %640 = vmatprep.subr.mxu0 0.0
  %641 = vmatpush1.msra.mxu0 %v219
  %642 = vmatprep.subr.mxu0 0.0
  %643 = vmatpush1.msra.mxu0 %v220
  %644 = vmatprep.subr.mxu0 0.0
  %645 = vmatpush1.msra.mxu0 %v221
  %646 = vmatprep.mubr.f32.mxu0 %v19
  %647 = vmatmul.mubr.f32.gmra.mrb[0].mxu0 %v18
  %v648 = vpop.f32.mrb[0].mxu0
  %v649 = vadd.f32 %v549, %v648
  %v650 = vpop.f32.mrb[0].mxu0
  %651 = vmatprep.mubr.f32.mxu0 %v35
  %652 = vmatmul.mubr.f32.gmra.mrb[0].mxu0 %v34
  %v653 = vpop.f32.mrb[0].mxu0
  %v654 = vadd.f32 %v554, %v653
  %v655 = vpop.f32.mrb[0].mxu0
  %656 = vmatprep.mubr.f32.mxu0 %v51
  %657 = vmatmul.mubr.f32.gmra.mrb[0].mxu0 %v50
  %v658 = vpop.f32.mrb[0].mxu0
  %v659 = vadd.f32 %v559, %v658
  %v660 = vpop.f32.mrb[0].mxu0
  %661 = vmatprep.mubr.f32.mxu0 %v67
  %662 = vmatmul.mubr.f32.gmra.mrb[0].mxu0 %v66
  %v663 = vpop.f32.mrb[0].mxu0
  %v664 = vadd.f32 %v564, %v663
  %v665 = vpop.f32.mrb[0].mxu0
  %666 = vmatprep.mubr.f32.mxu0 %v83
  %667 = vmatmul.mubr.f32.gmra.mrb[0].mxu0 %v82
  %v668 = vpop.f32.mrb[0].mxu0
  %v669 = vadd.f32 %v569, %v668
  %v670 = vpop.f32.mrb[0].mxu0
  %671 = vmatprep.mubr.f32.mxu0 %v99
  %672 = vmatmul.mubr.f32.gmra.mrb[0].mxu0 %v98
  %v673 = vpop.f32.mrb[0].mxu0
  %v674 = vadd.f32 %v574, %v673
  %v675 = vpop.f32.mrb[0].mxu0
  %676 = vmatprep.mubr.f32.mxu0 %v115
  %677 = vmatmul.mubr.f32.gmra.mrb[0].mxu0 %v114
  %v678 = vpop.f32.mrb[0].mxu0
  %v679 = vadd.f32 %v579, %v678
  %v680 = vpop.f32.mrb[0].mxu0
  %681 = vdwg.mxu0
  %682 = vmatprep.subr.mxu0 0.0
  %683 = vmatpush1.msra.mxu0 %v222
  %684 = vmatprep.subr.mxu0 0.0
  %685 = vmatpush1.msra.mxu0 %v223
  %686 = vmatprep.subr.mxu0 0.0
  %687 = vmatpush1.msra.mxu0 %v224
  %688 = vmatprep.subr.mxu0 0.0
  %689 = vmatpush1.msra.mxu0 %v225
  %690 = vmatprep.subr.mxu0 0.0
  %691 = vmatpush1.msra.mxu0 %v226
  %692 = vmatprep.subr.mxu0 0.0
  %693 = vmatpush1.msra.mxu0 %v227
  %694 = vmatprep.subr.mxu0 0.0
  %695 = vmatpush1.msra.mxu0 %v228
  %696 = vmatprep.subr.mxu0 0.0
  %697 = vmatpush1.msra.mxu0 %v229
  %698 = vmatprep.subr.mxu0 0.0
  %699 = vmatpush1.msra.mxu0 %v230
  %700 = vmatprep.subr.mxu0 0.0
  %701 = vmatpush1.msra.mxu0 %v231
  %702 = vmatprep.subr.mxu0 0.0
  %703 = vmatpush1.msra.mxu0 %v232
  %704 = vmatprep.subr.mxu0 0.0
  %705 = vmatpush1.msra.mxu0 %v233
  %706 = vmatprep.subr.mxu0 0.0
  %707 = vmatpush1.msra.mxu0 %v234
  %708 = vmatprep.subr.mxu0 0.0
  %709 = vmatpush1.msra.mxu0 %v235
  %710 = vmatprep.subr.mxu0 0.0
  %711 = vmatpush1.msra.mxu0 %v236
  %712 = vmatprep.subr.mxu0 0.0
  %713 = vmatpush1.msra.mxu0 %v237
  %714 = vmatprep.subr.mxu0 0.0
  %715 = vmatpush1.msra.mxu0 %v238
  %716 = vmatprep.subr.mxu0 0.0
  %717 = vmatpush1.msra.mxu0 %v239
  %718 = vmatprep.subr.mxu0 0.0
  %719 = vmatpush1.msra.mxu0 %v240
  %720 = vmatprep.subr.mxu0 0.0
  %721 = vmatpush1.msra.mxu0 %v241
  %722 = vmatprep.subr.mxu0 0.0
  %723 = vmatpush1.msra.mxu0 %v242
  %724 = vmatprep.subr.mxu0 0.0
  %725 = vmatpush1.msra.mxu0 %v243
  %726 = vmatprep.subr.mxu0 0.0
  %727 = vmatpush1.msra.mxu0 %v244
  %728 = vmatprep.subr.mxu0 0.0
  %729 = vmatpush1.msra.mxu0 %v245
  %730 = vmatprep.subr.mxu0 0.0
  %731 = vmatpush1.msra.mxu0 %v246
  %732 = vmatprep.subr.mxu0 0.0
  %733 = vmatpush1.msra.mxu0 %v247
  %734 = vmatprep.subr.mxu0 0.0
  %735 = vmatpush1.msra.mxu0 %v248
  %736 = vmatprep.subr.mxu0 0.0
  %737 = vmatpush1.msra.mxu0 %v249
  %738 = vmatprep.subr.mxu0 0.0
  %739 = vmatpush1.msra.mxu0 %v250
  %740 = vmatprep.subr.mxu0 0.0
  %741 = vmatpush1.msra.mxu0 %v251
  %742 = vmatprep.subr.mxu0 0.0
  %743 = vmatpush1.msra.mxu0 %v252
  %744 = vmatprep.subr.mxu0 0.0
  %745 = vmatpush1.msra.mxu0 %v253
  %746 = vmatprep.mubr.f32.mxu0 %v21
  %747 = vmatmul.mubr.f32.gmra.mrb[0].mxu0 %v20
  %v748 = vpop.f32.mrb[0].mxu0
  %v749 = vadd.f32 %v649, %v748
  %v750 = vpop.f32.mrb[0].mxu0
  %751 = vmatprep.mubr.f32.mxu0 %v37
  %752 = vmatmul.mubr.f32.gmra.mrb[0].mxu0 %v36
  %v753 = vpop.f32.mrb[0].mxu0
  %v754 = vadd.f32 %v654, %v753
  %v755 = vpop.f32.mrb[0].mxu0
  %756 = vmatprep.mubr.f32.mxu0 %v53
  %757 = vmatmul.mubr.f32.gmra.mrb[0].mxu0 %v52
  %v758 = vpop.f32.mrb[0].mxu0
  %v759 = vadd.f32 %v659, %v758
  %v760 = vpop.f32.mrb[0].mxu0
  %761 = vmatprep.mubr.f32.mxu0 %v69
  %762 = vmatmul.mubr.f32.gmra.mrb[0].mxu0 %v68
  %v763 = vpop.f32.mrb[0].mxu0
  %v764 = vadd.f32 %v664, %v763
  %v765 = vpop.f32.mrb[0].mxu0
  %766 = vmatprep.mubr.f32.mxu0 %v85
  %767 = vmatmul.mubr.f32.gmra.mrb[0].mxu0 %v84
  %v768 = vpop.f32.mrb[0].mxu0
  %v769 = vadd.f32 %v669, %v768
  %v770 = vpop.f32.mrb[0].mxu0
  %771 = vmatprep.mubr.f32.mxu0 %v101
  %772 = vmatmul.mubr.f32.gmra.mrb[0].mxu0 %v100
  %v773 = vpop.f32.mrb[0].mxu0
  %v774 = vadd.f32 %v674, %v773
  %v775 = vpop.f32.mrb[0].mxu0
  %776 = vmatprep.mubr.f32.mxu0 %v117
  %777 = vmatmul.mubr.f32.gmra.mrb[0].mxu0 %v116
  %v778 = vpop.f32.mrb[0].mxu0
  %v779 = vadd.f32 %v679, %v778
  %v780 = vpop.f32.mrb[0].mxu0
  %781 = vdwg.mxu0
  %782 = vmatprep.subr.mxu0 0.0
  %783 = vmatpush1.msra.mxu0 %v254
  %784 = vmatprep.subr.mxu0 0.0
  %785 = vmatpush1.msra.mxu0 %v255
  %786 = vmatprep.subr.mxu0 0.0
  %787 = vmatpush1.msra.mxu0 %v256
  %788 = vmatprep.subr.mxu0 0.0
  %789 = vmatpush1.msra.mxu0 %v257
  %790 = vmatprep.subr.mxu0 0.0
  %791 = vmatpush1.msra.mxu0 %v258
  %792 = vmatprep.subr.mxu0 0.0
  %793 = vmatpush1.msra.mxu0 %v259
  %794 = vmatprep.subr.mxu0 0.0
  %795 = vmatpush1.msra.mxu0 %v260
  %796 = vmatprep.subr.mxu0 0.0
  %797 = vmatpush1.msra.mxu0 %v261
  %798 = vmatprep.subr.mxu0 0.0
  %799 = vmatpush1.msra.mxu0 %v262
  %800 = vmatprep.subr.mxu0 0.0
  %801 = vmatpush1.msra.mxu0 %v263
  %802 = vmatprep.subr.mxu0 0.0
  %803 = vmatpush1.msra.mxu0 %v264
  %804 = vmatprep.subr.mxu0 0.0
  %805 = vmatpush1.msra.mxu0 %v265
  %806 = vmatprep.subr.mxu0 0.0
  %807 = vmatpush1.msra.mxu0 %v266
  %808 = vmatprep.subr.mxu0 0.0
  %809 = vmatpush1.msra.mxu0 %v267
  %810 = vmatprep.subr.mxu0 0.0
  %811 = vmatpush1.msra.mxu0 %v268
  %812 = vmatprep.subr.mxu0 0.0
  %813 = vmatpush1.msra.mxu0 %v269
  %814 = vmatprep.subr.mxu0 0.0
  %815 = vmatpush1.msra.mxu0 %v270
  %816 = vmatprep.subr.mxu0 0.0
  %817 = vmatpush1.msra.mxu0 %v271
  %818 = vmatprep.subr.mxu0 0.0
  %819 = vmatpush1.msra.mxu0 %v272
  %820 = vmatprep.subr.mxu0 0.0
  %821 = vmatpush1.msra.mxu0 %v273
  %822 = vmatprep.subr.mxu0 0.0
  %823 = vmatpush1.msra.mxu0 %v274
  %824 = vmatprep.subr.mxu0 0.0
  %825 = vmatpush1.msra.mxu0 %v275
  %826 = vmatprep.subr.mxu0 0.0
  %827 = vmatpush1.msra.mxu0 %v276
  %828 = vmatprep.subr.mxu0 0.0
  %829 = vmatpush1.msra.mxu0 %v277
  %830 = vmatprep.subr.mxu0 0.0
  %831 = vmatpush1.msra.mxu0 %v278
  %832 = vmatprep.subr.mxu0 0.0
  %833 = vmatpush1.msra.mxu0 %v279
  %834 = vmatprep.subr.mxu0 0.0
  %835 = vmatpush1.msra.mxu0 %v280
  %836 = vmatprep.subr.mxu0 0.0
  %837 = vmatpush1.msra.mxu0 %v281
  %838 = vmatprep.subr.mxu0 0.0
  %839 = vmatpush1.msra.mxu0 %v282
  %840 = vmatprep.subr.mxu0 0.0
  %841 = vmatpush1.msra.mxu0 %v283
  %842 = vmatprep.subr.mxu0 0.0
  %843 = vmatpush1.msra.mxu0 %v284
  %844 = vmatprep.subr.mxu0 0.0
  %845 = vmatpush1.msra.mxu0 %v285
  %846 = vmatprep.mubr.f32.mxu0 %v23
  %847 = vmatmul.mubr.f32.gmra.mrb[0].mxu0 %v22
  %v848 = vpop.f32.mrb[0].mxu0
  %v849 = vadd.f32 %v749, %v848
  %v850 = vpop.f32.mrb[0].mxu0
  %851 = vmatprep.mubr.f32.mxu0 %v39
  %852 = vmatmul.mubr.f32.gmra.mrb[0].mxu0 %v38
  %v853 = vpop.f32.mrb[0].mxu0
  %v854 = vadd.f32 %v754, %v853
  %v855 = vpop.f32.mrb[0].mxu0
  %856 = vmatprep.mubr.f32.mxu0 %v55
  %857 = vmatmul.mubr.f32.gmra.mrb[0].mxu0 %v54
  %v858 = vpop.f32.mrb[0].mxu0
  %v859 = vadd.f32 %v759, %v858
  %v860 = vpop.f32.mrb[0].mxu0
  %861 = vmatprep.mubr.f32.mxu0 %v71
  %862 = vmatmul.mubr.f32.gmra.mrb[0].mxu0 %v70
  %v863 = vpop.f32.mrb[0].mxu0
  %v864 = vadd.f32 %v764, %v863
  %v865 = vpop.f32.mrb[0].mxu0
  %866 = vmatprep.mubr.f32.mxu0 %v87
  %867 = vmatmul.mubr.f32.gmra.mrb[0].mxu0 %v86
  %v868 = vpop.f32.mrb[0].mxu0
  %v869 = vadd.f32 %v769, %v868
  %v870 = vpop.f32.mrb[0].mxu0
  %871 = vmatprep.mubr.f32.mxu0 %v103
  %872 = vmatmul.mubr.f32.gmra.mrb[0].mxu0 %v102
  %v873 = vpop.f32.mrb[0].mxu0
  %v874 = vadd.f32 %v774, %v873
  %v875 = vpop.f32.mrb[0].mxu0
  %876 = vmatprep.mubr.f32.mxu0 %v119
  %877 = vmatmul.mubr.f32.gmra.mrb[0].mxu0 %v118
  %v878 = vpop.f32.mrb[0].mxu0
  %v879 = vadd.f32 %v779, %v878
  %v880 = vpop.f32.mrb[0].mxu0
  %881 = vdwg.mxu0
  %882 = vmatprep.subr.mxu0 0.0
  %883 = vmatpush1.msra.mxu0 %v286
  %884 = vmatprep.subr.mxu0 0.0
  %885 = vmatpush1.msra.mxu0 %v287
  %886 = vmatprep.subr.mxu0 0.0
  %887 = vmatpush1.msra.mxu0 %v288
  %888 = vmatprep.subr.mxu0 0.0
  %889 = vmatpush1.msra.mxu0 %v289
  %890 = vmatprep.subr.mxu0 0.0
  %891 = vmatpush1.msra.mxu0 %v290
  %892 = vmatprep.subr.mxu0 0.0
  %893 = vmatpush1.msra.mxu0 %v291
  %894 = vmatprep.subr.mxu0 0.0
  %895 = vmatpush1.msra.mxu0 %v292
  %896 = vmatprep.subr.mxu0 0.0
  %897 = vmatpush1.msra.mxu0 %v293
  %898 = vmatprep.subr.mxu0 0.0
  %899 = vmatpush1.msra.mxu0 %v294
  %900 = vmatprep.subr.mxu0 0.0
  %901 = vmatpush1.msra.mxu0 %v295
  %902 = vmatprep.subr.mxu0 0.0
  %903 = vmatpush1.msra.mxu0 %v296
  %904 = vmatprep.subr.mxu0 0.0
  %905 = vmatpush1.msra.mxu0 %v297
  %906 = vmatprep.subr.mxu0 0.0
  %907 = vmatpush1.msra.mxu0 %v298
  %908 = vmatprep.subr.mxu0 0.0
  %909 = vmatpush1.msra.mxu0 %v299
  %910 = vmatprep.subr.mxu0 0.0
  %911 = vmatpush1.msra.mxu0 %v300
  %912 = vmatprep.subr.mxu0 0.0
  %913 = vmatpush1.msra.mxu0 %v301
  %914 = vmatprep.subr.mxu0 0.0
  %915 = vmatpush1.msra.mxu0 %v302
  %916 = vmatprep.subr.mxu0 0.0
  %917 = vmatpush1.msra.mxu0 %v303
  %918 = vmatprep.subr.mxu0 0.0
  %919 = vmatpush1.msra.mxu0 %v304
  %920 = vmatprep.subr.mxu0 0.0
  %921 = vmatpush1.msra.mxu0 %v305
  %922 = vmatprep.subr.mxu0 0.0
  %923 = vmatpush1.msra.mxu0 %v306
  %924 = vmatprep.subr.mxu0 0.0
  %925 = vmatpush1.msra.mxu0 %v307
  %926 = vmatprep.subr.mxu0 0.0
  %927 = vmatpush1.msra.mxu0 %v308
  %928 = vmatprep.subr.mxu0 0.0
  %929 = vmatpush1.msra.mxu0 %v309
  %930 = vmatprep.subr.mxu0 0.0
  %931 = vmatpush1.msra.mxu0 %v310
  %932 = vmatprep.subr.mxu0 0.0
  %933 = vmatpush1.msra.mxu0 %v311
  %934 = vmatprep.subr.mxu0 0.0
  %935 = vmatpush1.msra.mxu0 %v312
  %936 = vmatprep.subr.mxu0 0.0
  %937 = vmatpush1.msra.mxu0 %v313
  %938 = vmatprep.subr.mxu0 0.0
  %939 = vmatpush1.msra.mxu0 %v314
  %940 = vmatprep.subr.mxu0 0.0
  %941 = vmatpush1.msra.mxu0 %v315
  %942 = vmatprep.subr.mxu0 0.0
  %943 = vmatpush1.msra.mxu0 %v316
  %944 = vmatprep.subr.mxu0 0.0
  %945 = vmatpush1.msra.mxu0 %v317
  %946 = vmatprep.mubr.f32.mxu0 %v25
  %947 = vmatmul.mubr.f32.gmra.mrb[0].mxu0 %v24
  %v948 = vpop.f32.mrb[0].mxu0
  %v949 = vadd.f32 %v849, %v948
  %v950 = vpop.f32.mrb[0].mxu0
  %951 = vmatprep.mubr.f32.mxu0 %v41
  %952 = vmatmul.mubr.f32.gmra.mrb[0].mxu0 %v40
  %v953 = vpop.f32.mrb[0].mxu0
  %v954 = vadd.f32 %v854, %v953
  %v955 = vpop.f32.mrb[0].mxu0
  %956 = vmatprep.mubr.f32.mxu0 %v57
  %957 = vmatmul.mubr.f32.gmra.mrb[0].mxu0 %v56
  %v958 = vpop.f32.mrb[0].mxu0
  %v959 = vadd.f32 %v859, %v958
  %v960 = vpop.f32.mrb[0].mxu0
  %961 = vmatprep.mubr.f32.mxu0 %v73
  %962 = vmatmul.mubr.f32.gmra.mrb[0].mxu0 %v72
  %v963 = vpop.f32.mrb[0].mxu0
  %v964 = vadd.f32 %v864, %v963
  %v965 = vpop.f32.mrb[0].mxu0
  %966 = vmatprep.mubr.f32.mxu0 %v89
  %967 = vmatmul.mubr.f32.gmra.mrb[0].mxu0 %v88
  %v968 = vpop.f32.mrb[0].mxu0
  %v969 = vadd.f32 %v869, %v968
  %v970 = vpop.f32.mrb[0].mxu0
  %971 = vmatprep.mubr.f32.mxu0 %v105
  %972 = vmatmul.mubr.f32.gmra.mrb[0].mxu0 %v104
  %v973 = vpop.f32.mrb[0].mxu0
  %v974 = vadd.f32 %v874, %v973
  %v975 = vpop.f32.mrb[0].mxu0
  %976 = vmatprep.mubr.f32.mxu0 %v121
  %977 = vmatmul.mubr.f32.gmra.mrb[0].mxu0 %v120
  %v978 = vpop.f32.mrb[0].mxu0
  %v979 = vadd.f32 %v879, %v978
  %v980 = vpop.f32.mrb[0].mxu0
  %981 = vdwg.mxu0
  %982 = vmatprep.subr.mxu0 0.0
  %983 = vmatpush1.msra.mxu0 %v318
  %984 = vmatprep.subr.mxu0 0.0
  %985 = vmatpush1.msra.mxu0 %v319
  %986 = vmatprep.subr.mxu0 0.0
  %987 = vmatpush1.msra.mxu0 %v320
  %988 = vmatprep.subr.mxu0 0.0
  %989 = vmatpush1.msra.mxu0 %v321
  %990 = vmatprep.subr.mxu0 0.0
  %991 = vmatpush1.msra.mxu0 %v322
  %992 = vmatprep.subr.mxu0 0.0
  %993 = vmatpush1.msra.mxu0 %v323
  %994 = vmatprep.subr.mxu0 0.0
  %995 = vmatpush1.msra.mxu0 %v324
  %996 = vmatprep.subr.mxu0 0.0
  %997 = vmatpush1.msra.mxu0 %v325
  %998 = vmatprep.subr.mxu0 0.0
  %999 = vmatpush1.msra.mxu0 %v326
  %1000 = vmatprep.subr.mxu0 0.0
  %1001 = vmatpush1.msra.mxu0 %v327
  %1002 = vmatprep.subr.mxu0 0.0
  %1003 = vmatpush1.msra.mxu0 %v328
  %1004 = vmatprep.subr.mxu0 0.0
  %1005 = vmatpush1.msra.mxu0 %v329
  %1006 = vmatprep.subr.mxu0 0.0
  %1007 = vmatpush1.msra.mxu0 %v330
  %1008 = vmatprep.subr.mxu0 0.0
  %1009 = vmatpush1.msra.mxu0 %v331
  %1010 = vmatprep.subr.mxu0 0.0
  %1011 = vmatpush1.msra.mxu0 %v332
  %1012 = vmatprep.subr.mxu0 0.0
  %1013 = vmatpush1.msra.mxu0 %v333
  %1014 = vmatprep.subr.mxu0 0.0
  %1015 = vmatpush1.msra.mxu0 %v334
  %1016 = vmatprep.subr.mxu0 0.0
  %1017 = vmatpush1.msra.mxu0 %v335
  %1018 = vmatprep.subr.mxu0 0.0
  %1019 = vmatpush1.msra.mxu0 %v336
  %1020 = vmatprep.subr.mxu0 0.0
  %1021 = vmatpush1.msra.mxu0 %v337
  %1022 = vmatprep.subr.mxu0 0.0
  %1023 = vmatpush1.msra.mxu0 %v338
  %1024 = vmatprep.subr.mxu0 0.0
  %1025 = vmatpush1.msra.mxu0 %v339
  %1026 = vmatprep.subr.mxu0 0.0
  %1027 = vmatpush1.msra.mxu0 %v340
  %1028 = vmatprep.subr.mxu0 0.0
  %1029 = vmatpush1.msra.mxu0 %v341
  %1030 = vmatprep.subr.mxu0 0.0
  %1031 = vmatpush1.msra.mxu0 %v342
  %1032 = vmatprep.subr.mxu0 0.0
  %1033 = vmatpush1.msra.mxu0 %v343
  %1034 = vmatprep.subr.mxu0 0.0
  %1035 = vmatpush1.msra.mxu0 %v344
  %1036 = vmatprep.subr.mxu0 0.0
  %1037 = vmatpush1.msra.mxu0 %v345
  %1038 = vmatprep.subr.mxu0 0.0
  %1039 = vmatpush1.msra.mxu0 %v346
  %1040 = vmatprep.subr.mxu0 0.0
  %1041 = vmatpush1.msra.mxu0 %v347
  %1042 = vmatprep.subr.mxu0 0.0
  %1043 = vmatpush1.msra.mxu0 %v348
  %1044 = vmatprep.subr.mxu0 0.0
  %1045 = vmatpush1.msra.mxu0 %v349
  %1046 = vmatprep.mubr.f32.mxu0 %v27
  %1047 = vmatmul.mubr.f32.gmra.mrb[0].mxu0 %v26
  %v1048 = vpop.f32.mrb[0].mxu0
  %v1049 = vadd.f32 %v949, %v1048
  %v1050 = vpop.f32.mrb[0].mxu0
  %1051 = vmatprep.mubr.f32.mxu0 %v43
  %1052 = vmatmul.mubr.f32.gmra.mrb[0].mxu0 %v42
  %v1053 = vpop.f32.mrb[0].mxu0
  %v1054 = vadd.f32 %v954, %v1053
  %v1055 = vpop.f32.mrb[0].mxu0
  %1056 = vmatprep.mubr.f32.mxu0 %v59
  %1057 = vmatmul.mubr.f32.gmra.mrb[0].mxu0 %v58
  %v1058 = vpop.f32.mrb[0].mxu0
  %v1059 = vadd.f32 %v959, %v1058
  %v1060 = vpop.f32.mrb[0].mxu0
  %1061 = vmatprep.mubr.f32.mxu0 %v75
  %1062 = vmatmul.mubr.f32.gmra.mrb[0].mxu0 %v74
  %v1063 = vpop.f32.mrb[0].mxu0
  %v1064 = vadd.f32 %v964, %v1063
  %v1065 = vpop.f32.mrb[0].mxu0
  %1066 = vmatprep.mubr.f32.mxu0 %v91
  %1067 = vmatmul.mubr.f32.gmra.mrb[0].mxu0 %v90
  %v1068 = vpop.f32.mrb[0].mxu0
  %v1069 = vadd.f32 %v969, %v1068
  %v1070 = vpop.f32.mrb[0].mxu0
  %1071 = vmatprep.mubr.f32.mxu0 %v107
  %1072 = vmatmul.mubr.f32.gmra.mrb[0].mxu0 %v106
  %v1073 = vpop.f32.mrb[0].mxu0
  %v1074 = vadd.f32 %v974, %v1073
  %v1075 = vpop.f32.mrb[0].mxu0
  %1076 = vmatprep.mubr.f32.mxu0 %v123
  %1077 = vmatmul.mubr.f32.gmra.mrb[0].mxu0 %v122
  %v1078 = vpop.f32.mrb[0].mxu0
  %v1079 = vadd.f32 %v979, %v1078
  %v1080 = vpop.f32.mrb[0].mxu0
  %1081 = vdwg.mxu0
  %1082 = vmatprep.subr.mxu0 0.0
  %1083 = vmatpush1.msra.mxu0 %v350
  %1084 = vmatprep.subr.mxu0 0.0
  %1085 = vmatpush1.msra.mxu0 %v351
  %1086 = vmatprep.subr.mxu0 0.0
  %1087 = vmatpush1.msra.mxu0 %v352
  %1088 = vmatprep.subr.mxu0 0.0
  %1089 = vmatpush1.msra.mxu0 %v353
  %1090 = vmatprep.subr.mxu0 0.0
  %1091 = vmatpush1.msra.mxu0 %v354
  %1092 = vmatprep.subr.mxu0 0.0
  %1093 = vmatpush1.msra.mxu0 %v355
  %1094 = vmatprep.subr.mxu0 0.0
  %1095 = vmatpush1.msra.mxu0 %v356
  %1096 = vmatprep.subr.mxu0 0.0
  %1097 = vmatpush1.msra.mxu0 %v357
  %1098 = vmatprep.subr.mxu0 0.0
  %1099 = vmatpush1.msra.mxu0 %v358
  %1100 = vmatprep.subr.mxu0 0.0
  %1101 = vmatpush1.msra.mxu0 %v359
  %1102 = vmatprep.subr.mxu0 0.0
  %1103 = vmatpush1.msra.mxu0 %v360
  %1104 = vmatprep.subr.mxu0 0.0
  %1105 = vmatpush1.msra.mxu0 %v361
  %1106 = vmatprep.subr.mxu0 0.0
  %1107 = vmatpush1.msra.mxu0 %v362
  %1108 = vmatprep.subr.mxu0 0.0
  %1109 = vmatpush1.msra.mxu0 %v363
  %1110 = vmatprep.subr.mxu0 0.0
  %1111 = vmatpush1.msra.mxu0 %v364
  %1112 = vmatprep.subr.mxu0 0.0
  %1113 = vmatpush1.msra.mxu0 %v365
  %1114 = vmatprep.subr.mxu0 0.0
  %1115 = vmatpush1.msra.mxu0 %v366
  %1116 = vmatprep.subr.mxu0 0.0
  %1117 = vmatpush1.msra.mxu0 %v367
  %1118 = vmatprep.subr.mxu0 0.0
  %1119 = vmatpush1.msra.mxu0 %v368
  %1120 = vmatprep.subr.mxu0 0.0
  %1121 = vmatpush1.msra.mxu0 %v369
  %1122 = vmatprep.subr.mxu0 0.0
  %1123 = vmatpush1.msra.mxu0 %v370
  %1124 = vmatprep.subr.mxu0 0.0
  %1125 = vmatpush1.msra.mxu0 %v371
  %1126 = vmatprep.subr.mxu0 0.0
  %1127 = vmatpush1.msra.mxu0 %v372
  %1128 = vmatprep.subr.mxu0 0.0
  %1129 = vmatpush1.msra.mxu0 %v373
  %1130 = vmatprep.subr.mxu0 0.0
  %1131 = vmatpush1.msra.mxu0 %v374
  %1132 = vmatprep.subr.mxu0 0.0
  %1133 = vmatpush1.msra.mxu0 %v375
  %1134 = vmatprep.subr.mxu0 0.0
  %1135 = vmatpush1.msra.mxu0 %v376
  %1136 = vmatprep.subr.mxu0 0.0
  %1137 = vmatpush1.msra.mxu0 %v377
  %1138 = vmatprep.subr.mxu0 0.0
  %1139 = vmatpush1.msra.mxu0 %v378
  %1140 = vmatprep.subr.mxu0 0.0
  %1141 = vmatpush1.msra.mxu0 %v379
  %1142 = vmatprep.subr.mxu0 0.0
  %1143 = vmatpush1.msra.mxu0 %v380
  %1144 = vmatprep.subr.mxu0 0.0
  %1145 = vmatpush1.msra.mxu0 %v381
  %1146 = vmatprep.mubr.f32.mxu0 %v29
  %1147 = vmatmul.mubr.f32.gmra.mrb[0].mxu0 %v28
  %v1148 = vpop.f32.mrb[0].mxu0
  %v1149 = vadd.f32 %v1049, %v1148
  %v1150 = vpop.f32.mrb[0].mxu0
  %1151 = vmatprep.mubr.f32.mxu0 %v45
  %1152 = vmatmul.mubr.f32.gmra.mrb[0].mxu0 %v44
  %v1153 = vpop.f32.mrb[0].mxu0
  %v1154 = vadd.f32 %v1054, %v1153
  %v1155 = vpop.f32.mrb[0].mxu0
  %1156 = vmatprep.mubr.f32.mxu0 %v61
  %1157 = vmatmul.mubr.f32.gmra.mrb[0].mxu0 %v60
  %v1158 = vpop.f32.mrb[0].mxu0
  %v1159 = vadd.f32 %v1059, %v1158
  %v1160 = vpop.f32.mrb[0].mxu0
  %1161 = vmatprep.mubr.f32.mxu0 %v77
  %1162 = vmatmul.mubr.f32.gmra.mrb[0].mxu0 %v76
  %v1163 = vpop.f32.mrb[0].mxu0
  %v1164 = vadd.f32 %v1064, %v1163
  %v1165 = vpop.f32.mrb[0].mxu0
  %1166 = vmatprep.mubr.f32.mxu0 %v93
  %1167 = vmatmul.mubr.f32.gmra.mrb[0].mxu0 %v92
  %v1168 = vpop.f32.mrb[0].mxu0
  %v1169 = vadd.f32 %v1069, %v1168
  %v1170 = vpop.f32.mrb[0].mxu0
  %1171 = vmatprep.mubr.f32.mxu0 %v109
  %1172 = vmatmul.mubr.f32.gmra.mrb[0].mxu0 %v108
  %v1173 = vpop.f32.mrb[0].mxu0
  %v1174 = vadd.f32 %v1074, %v1173
  %v1175 = vpop.f32.mrb[0].mxu0
  %1176 = vmatprep.mubr.f32.mxu0 %v125
  %1177 = vmatmul.mubr.f32.gmra.mrb[0].mxu0 %v124
  %v1178 = vpop.f32.mrb[0].mxu0
  %v1179 = vadd.f32 %v1079, %v1178
  %v1180 = vpop.f32.mrb[0].mxu0
  %1181 = vdwg.mxu0
  %1189 = vrot.lane.b32.xlu0 %v1149, 112
  %v1190 = vpop.permute.xlu0 %1189
  %1191 = vrot.lane.b32.xlu0 %v1154, 112
  %v1192 = vpop.permute.xlu0 %1191
  %1193 = vrot.lane.b32.xlu0 %v1159, 112
  %v1194 = vpop.permute.xlu0 %1193
  %1195 = vrot.lane.b32.xlu0 %v1164, 112
  %v1196 = vpop.permute.xlu0 %1195
  %1197 = vrot.lane.b32.xlu0 %v1169, 112
  %v1198 = vpop.permute.xlu0 %1197
  %1199 = vrot.lane.b32.xlu0 %v1174, 112
  %v1200 = vpop.permute.xlu0 %1199
  %1201 = vrot.lane.b32.xlu0 %v1179, 112
  %v1202 = vpop.permute.xlu0 %1201
  %v1210 = vmax.f32 %v1149, %v1190
  %v1211 = vmax.f32 %v1154, %v1192
  %v1212 = vmax.f32 %v1159, %v1194
  %v1213 = vmax.f32 %v1164, %v1196
  %v1214 = vmax.f32 %v1169, %v1198
  %v1215 = vmax.f32 %v1174, %v1200
  %v1216 = vmax.f32 %v1179, %v1202
  %1217 = vrot.lane.b32.xlu0 %v1149, 96
  %v1218 = vpop.permute.xlu0 %1217
  %1219 = vrot.lane.b32.xlu0 %v1154, 96
  %v1220 = vpop.permute.xlu0 %1219
  %1221 = vrot.lane.b32.xlu0 %v1159, 96
  %v1222 = vpop.permute.xlu0 %1221
  %1223 = vrot.lane.b32.xlu0 %v1164, 96
  %v1224 = vpop.permute.xlu0 %1223
  %1225 = vrot.lane.b32.xlu0 %v1169, 96
  %v1226 = vpop.permute.xlu0 %1225
  %1227 = vrot.lane.b32.xlu0 %v1174, 96
  %v1228 = vpop.permute.xlu0 %1227
  %1229 = vrot.lane.b32.xlu0 %v1179, 96
  %v1230 = vpop.permute.xlu0 %1229
  %v1238 = vmax.f32 %v1210, %v1218
  %v1239 = vmax.f32 %v1211, %v1220
  %v1240 = vmax.f32 %v1212, %v1222
  %v1241 = vmax.f32 %v1213, %v1224
  %v1242 = vmax.f32 %v1214, %v1226
  %v1243 = vmax.f32 %v1215, %v1228
  %v1244 = vmax.f32 %v1216, %v1230
  %1245 = vrot.lane.b32.xlu0 %v1149, 80
  %v1246 = vpop.permute.xlu0 %1245
  %1247 = vrot.lane.b32.xlu0 %v1154, 80
  %v1248 = vpop.permute.xlu0 %1247
  %1249 = vrot.lane.b32.xlu0 %v1159, 80
  %v1250 = vpop.permute.xlu0 %1249
  %1251 = vrot.lane.b32.xlu0 %v1164, 80
  %v1252 = vpop.permute.xlu0 %1251
  %1253 = vrot.lane.b32.xlu0 %v1169, 80
  %v1254 = vpop.permute.xlu0 %1253
  %1255 = vrot.lane.b32.xlu0 %v1174, 80
  %v1256 = vpop.permute.xlu0 %1255
  %1257 = vrot.lane.b32.xlu0 %v1179, 80
  %v1258 = vpop.permute.xlu0 %1257
  %v1266 = vmax.f32 %v1238, %v1246
  %v1267 = vmax.f32 %v1239, %v1248
  %v1268 = vmax.f32 %v1240, %v1250
  %v1269 = vmax.f32 %v1241, %v1252
  %v1270 = vmax.f32 %v1242, %v1254
  %v1271 = vmax.f32 %v1243, %v1256
  %v1272 = vmax.f32 %v1244, %v1258
  %v1273 = vld [vmem:[%s2] sm:$0x1]
  %v1275 = vlaneseq
  %v1276 = vshrl.u32 %v1275, 7
  %v1277 = vsub.s32 0, %v1276
  %v1278 = vrot.slane %v1273, %v1277
  %v1280 = vadd.f32 %v1266, %v1278
  %v1281 = vadd.f32 %v1267, %v1278
  %v1282 = vadd.f32 %v1268, %v1278
  %v1283 = vadd.f32 %v1269, %v1278
  %v1284 = vadd.f32 %v1270, %v1278
  %v1285 = vadd.f32 %v1271, %v1278
  %v1286 = vadd.f32 %v1272, %v1278
  %v1287 = vmax.f32 %v1280, 0.0
  %v1288 = vmax.f32 %v1281, 0.0
  %v1289 = vmax.f32 %v1282, 0.0
  %v1290 = vmax.f32 %v1283, 0.0
  %v1291 = vmax.f32 %v1284, 0.0
  %v1292 = vmax.f32 %v1285, 0.0
  %v1293 = vmax.f32 %v1286, 0.0
  %vm1294 = vcmask 130048
  %1295 = vst.msk [vmem:[%s3] sm:$0xff] %vm1294, %v1287
  %1296 = vst.msk [vmem:[%s3 + $0x8] sm:$0xff] %vm1294, %v1288
  %1297 = vst.msk [vmem:[%s3 + $0x10] sm:$0xff] %vm1294, %v1289
  %1298 = vst.msk [vmem:[%s3 + $0x18] sm:$0xff] %vm1294, %v1290
  %1299 = vst.msk [vmem:[%s3 + $0x20] sm:$0xff] %vm1294, %v1291
  %1300 = vst.msk [vmem:[%s3 + $0x28] sm:$0xff] %vm1294, %v1292
  %1301 = vst.msk [vmem:[%s3 + $0x30] sm:$0xff] %vm1294, %v1293
  // Predicated region
  $region14: #{cnn_forward.4} parent=0 // pred_check
    _
  $region15: #{cnn_forward.4} parent=0 // pred_check_branch
    %1303 = sbr.rel (0) target = $region17
  $region16: #{cnn_forward.4} parent=0 // pred_region
    _
  $region17: #{cnn_forward.4} parent=0 // pred_fallthru
    _
  // Predicated region
  $region18: #{cnn_forward.4} parent=0 // pred_check
    _
  $region19: #{cnn_forward.4} parent=0 // pred_check_branch
    %1305 = sbr.rel (0) target = $region21
  $region20: #{cnn_forward.4} parent=0 // pred_region
    _
  $region21: #{cnn_forward.4} parent=0 // pred_fallthru
    _

// kernel: cnn_forward.5
$region0: #{cnn_forward.5}
  #allocation0 [shape = 'u32[]', space=smem, size = 0x4, offset = 0x4, fixed_abs, tag = 'smem constant byte address 0x4 - core index']
  #allocation1 [shape = 'u32[144,128]{1,0:T(1,128)}', space=vmem, size = 0x12000, scoped, tag = 'internal scratch']
  #allocation2 [shape = 'f32[1,1]{1,0:T(1,128)S(1)}', space=vmem, size = 0x200, scoped, tag = 'scoped memory for cnn_forward.5']
  %s0 = inlined_call_operand.vmem [shape: f32[8,400], index: 0, kind: input, shape index: {}]
  %s1 = inlined_call_operand.vmem [shape: f32[1,400], index: 1, kind: input, shape index: {}]
  %s2 = inlined_call_operand.<no memory space> [shape: f32[1,1], index: 2, kind: input, shape index: {}]
  %s3 = inlined_call_operand.vmem [shape: f32[8,1], index: 3, kind: output, shape index: {}]
  %s4 = sld [smem:[#allocation0]]
  $region22: #{cnn_forward.5} parent=0
    _
  %s6 = ssub.s32 1, %s4
  %s7 = scalar_select 0, %s6, %s4
  %v8 = vstv %s2
  %9 = vst [vmem:[#allocation2] sm:$0x1] %v8
  // Predicated region
  $region2: #{cnn_forward.5} parent=0 // pred_check
    _
  $region3: #{cnn_forward.5} parent=0 // pred_check_branch
    %11 = sbr.rel (0) target = $region5
  $region4: #{cnn_forward.5} parent=0 // pred_region
    _
  $region5: #{cnn_forward.5} parent=0 // pred_fallthru
    _
  // Predicated region
  $region6: #{cnn_forward.5} parent=0 // pred_check
    _
  $region7: #{cnn_forward.5} parent=0 // pred_check_branch
    %13 = sbr.rel (0) target = $region9
  $region8: #{cnn_forward.5} parent=0 // pred_region
    _
  $region9: #{cnn_forward.5} parent=0 // pred_fallthru
    _
  // Predicated region
  $region10: #{cnn_forward.5} parent=0 // pred_check
    _
  $region11: #{cnn_forward.5} parent=0 // pred_check_branch
    %15 = sbr.rel (0) target = $region13
  $region12: #{cnn_forward.5} parent=0 // pred_region
    _
  $region13: #{cnn_forward.5} parent=0 // pred_fallthru
    _
  %v16 = vld [vmem:[%s0] sm:$0xff]
  %v17 = vld [vmem:[%s0 + $0x8] sm:$0xff]
  %v18 = vld [vmem:[%s0 + $0x10] sm:$0xff]
  %v19 = vld [vmem:[%s0 + $0x18] sm:$0xff]
  %v20 = vld [vmem:[%s1] sm:$0xf]
  %v22 = vlaneseq
  %v23 = vshrl.u32 %v22, 7
  %v24 = vsub.s32 0, %v23
  %v25 = vrot.slane %v20, %v24
  %v26 = vlaneseq
  %v27 = vshrl.u32 %v26, 7
  %v28 = vsub.s32 1, %v27
  %v29 = vrot.slane %v20, %v28
  %v30 = vlaneseq
  %v31 = vshrl.u32 %v30, 7
  %v32 = vsub.s32 2, %v31
  %v33 = vrot.slane %v20, %v32
  %v34 = vlaneseq
  %v35 = vshrl.u32 %v34, 7
  %v36 = vsub.s32 3, %v35
  %v37 = vrot.slane %v20, %v36
  %v42 = vmul.f32 %v16, %v25
  %v43 = vmul.f32 %v17, %v29
  %v44 = vmul.f32 %v18, %v33
  %v45 = vmul.f32 %v19, %v37
  %v46 = vadd.f32 %v42, %v43
  %v47 = vadd.f32 %v46, %v44
  %vm48 = vcmask 130048
  %v49 = vsel %vm48, %v45, 0.0
  %v50 = vadd.f32 %v47, %v49
  %51 = vadd.xlane.f32.xlu0 %v50
  %v52 = vpop.xlane.xlu0 %51
  %v53 = vld [vmem:[#allocation2] sm:$0x1]
  %v55 = vlaneseq
  %v56 = vshrl.u32 %v55, 7
  %v57 = vsub.s32 0, %v56
  %v58 = vrot.slane %v53, %v57
  %v60 = vadd.f32 %v52, %v58
  %vm61 = vcmask 7168
  %62 = vst.msk [vmem:[%s3] sm:$0xff] %vm61, %v60
  // Predicated region
  $region14: #{cnn_forward.5} parent=0 // pred_check
    _
  $region15: #{cnn_forward.5} parent=0 // pred_check_branch
    %64 = sbr.rel (0) target = $region17
  $region16: #{cnn_forward.5} parent=0 // pred_region
    _
  $region17: #{cnn_forward.5} parent=0 // pred_fallthru
    _
  // Predicated region
  $region18: #{cnn_forward.5} parent=0 // pred_check
    _
  $region19: #{cnn_forward.5} parent=0 // pred_check_branch
    %66 = sbr.rel (0) target = $region21
  $region20: #{cnn_forward.5} parent=0 // pred_region
    _
  $region21: #{cnn_forward.5} parent=0 // pred_fallthru
    _

</llo_original>
